<compile_context>
chip_gen: v7x
topology: tpu7x:2x2x1
jax: 0.10.0
libtpu: 0.0.40
codegen_flags: <defaults>
</compile_context>

<pallas_src>
import functools

import numpy as np

import jax
import jax.numpy as jnp
from jax.experimental import pallas as pl
from jax.experimental.pallas import tpu as pltpu


# ----------------------------------------------------------------------------
# Fused kernel: one grid step == one image; everything stays in VMEM/vregs.
# ----------------------------------------------------------------------------
def _fused_rcnn_kernel(x_ref, g_ref, gb_ref, s_ref, r_ref, rb_ref,
                       hd_ref, hb_ref, pw1_ref, b1_ref, w2_ref, b2_ref,
                       rpn_ref, roi_ref, *, H):
    x = x_ref[0]                                            # (H+2, (W+2)*Cin) f32

    # ---- backbone || backbone2 3x3 conv (+ folded normalization) + ReLU ----
    # Banded row matmuls: out[h, :] = sum_dh x[h+dh, :] @ G[dh]
    acc = jnp.dot(x[0:H].astype(jnp.bfloat16), g_ref[0],
                  preferred_element_type=jnp.float32)
    acc += jnp.dot(x[1:H + 1].astype(jnp.bfloat16), g_ref[1],
                   preferred_element_type=jnp.float32)
    acc += jnp.dot(x[2:H + 2].astype(jnp.bfloat16), g_ref[2],
                   preferred_element_type=jnp.float32)
    nf = jnp.maximum(acc + gb_ref[...], 0.0)                # (H, (W+2)*Cf) f32
    # Columns w=-1 / w=W carry zero weights & bias -> exact zeros after ReLU,
    # i.e. nf already contains the zero W-halo the RPN conv needs.
    nf_b = nf.astype(jnp.bfloat16)

    # ---- ROI head: GAP (folded into fc1) -> ReLU -> (cls || bbox) ----
    colsum = jnp.sum(nf, axis=0, keepdims=True)             # (1, (W+2)*Cf) f32
    rep = jnp.dot(colsum.astype(jnp.bfloat16), pw1_ref[...],
                  preferred_element_type=jnp.float32) + b1_ref[...]
    rep = jnp.maximum(rep, 0.0)
    roi = jnp.dot(rep.astype(jnp.bfloat16), w2_ref[...],
                  preferred_element_type=jnp.float32) + b2_ref[...]
    roi_ref[0] = roi                                        # (1, 128) lane-dense

    # ---- RPN 3x3 conv (zero pad) + ReLU ----
    # H-halo via 0/1 shift matmuls (exact, no concat/pad); W-halo is the zero
    # columns already present in nf.
    nf_dn = jnp.dot(s_ref[0], nf_b,
                    preferred_element_type=jnp.float32).astype(jnp.bfloat16)
    nf_up = jnp.dot(s_ref[1], nf_b,
                    preferred_element_type=jnp.float32).astype(jnp.bfloat16)
    t = jnp.dot(nf_dn, r_ref[0], preferred_element_type=jnp.float32)
    t += jnp.dot(nf_b, r_ref[1], preferred_element_type=jnp.float32)
    t += jnp.dot(nf_up, r_ref[2], preferred_element_type=jnp.float32)
    t = jnp.maximum(t + rb_ref[...], 0.0)                   # (H, W*Cf) f32

    # ---- fused (objectness || bbox) 1x1 heads (block-diagonal weight) ----
    heads = jnp.dot(t.astype(jnp.bfloat16), hd_ref[...],
                    preferred_element_type=jnp.float32) + hb_ref[...]
    rpn_ref[0] = heads                                      # (H, W*Nh_pad) lane-dense


# ----------------------------------------------------------------------------
# GeneralizedRCNN (synthetic submodules, deterministic init)
# ----------------------------------------------------------------------------
class GeneralizedRCNNPallas:
    def __init__(self, key, image_hw=(16, 16), is_double_backbone=True,
                 backbone_out=8, num_anchors=3, num_classes=5, rep_size=32):
        H, W = image_hw
        self.H, self.W = H, W
        self.is_double_backbone = is_double_backbone
        self.num_anchors = num_anchors
        self.n_cls = num_classes
        self.rep_size = rep_size
        self.image_mean = jnp.array([0.485, 0.456, 0.406], jnp.float32)
        self.image_std = jnp.array([0.229, 0.224, 0.225], jnp.float32)

        ks = jax.random.split(key, 12)
        s = 0.1  # deterministic small-scale init

        # backbone / backbone2: one 3x3 conv + relu each (3 -> backbone_out)
        self.b1_w = s * jax.random.normal(ks[0], (backbone_out, 3, 3, 3), jnp.float32)
        self.b1_b = jnp.zeros((backbone_out,), jnp.float32)
        self.b2_w = s * jax.random.normal(ks[1], (backbone_out, 3, 3, 3), jnp.float32)
        self.b2_b = jnp.zeros((backbone_out,), jnp.float32)

        c_feat = 2 * backbone_out if is_double_backbone else backbone_out
        self.c_feat = c_feat

        # RPN head: 3x3 conv + relu, 1x1 objectness, 1x1 box deltas
        self.rpn_conv_w = s * jax.random.normal(ks[2], (c_feat, c_feat, 3, 3), jnp.float32)
        self.rpn_conv_b = jnp.zeros((c_feat,), jnp.float32)
        self.rpn_cls_w = s * jax.random.normal(ks[3], (num_anchors, c_feat, 1, 1), jnp.float32)
        self.rpn_cls_b = jnp.zeros((num_anchors,), jnp.float32)
        self.rpn_bbox_w = s * jax.random.normal(ks[4], (4 * num_anchors, c_feat, 1, 1), jnp.float32)
        self.rpn_bbox_b = jnp.zeros((4 * num_anchors,), jnp.float32)

        # ROI heads: pooled features -> FC -> class scores / box regression
        self.fc1_w = s * jax.random.normal(ks[5], (c_feat, rep_size), jnp.float32)
        self.fc1_b = jnp.zeros((rep_size,), jnp.float32)
        self.cls_w = s * jax.random.normal(ks[6], (rep_size, num_classes), jnp.float32)
        self.cls_b = jnp.zeros((num_classes,), jnp.float32)
        self.bbox_w = s * jax.random.normal(ks[7], (rep_size, 4 * num_classes), jnp.float32)
        self.bbox_b = jnp.zeros((4 * num_classes,), jnp.float32)

        self._build_kernel_params()

    # ---- kernel-friendly derived parameters (banded slabs, bf16, folded) ----
    def _build_kernel_params(self):
        H, W = self.H, self.W
        Cin, Cf = 3, self.c_feat
        A = self.num_anchors
        mean = np.asarray(self.image_mean)
        std = np.asarray(self.image_std)

        # Fused (double) backbone weights with normalization folded in.
        if self.is_double_backbone:
            w_cat = np.concatenate([np.asarray(self.b1_w), np.asarray(self.b2_w)], 0)
            b_cat = np.concatenate([np.asarray(self.b1_b), np.asarray(self.b2_b)], 0)
        else:
            w_cat, b_cat = np.asarray(self.b2_w), np.asarray(self.b2_b)
        w_hwio = np.transpose(w_cat, (2, 3, 1, 0))                      # (3,3,Cin,Cf)
        wf = w_hwio / std.reshape(1, 1, Cin, 1)
        bf = b_cat - np.sum(w_hwio * (mean / std).reshape(1, 1, Cin, 1), axis=(0, 1, 2))

        # Backbone band matrices: ((W+2)*Cin) -> ((W+2)*Cf); columns for
        # w=-1 / w=W have zero weights & bias so nf gets an exact zero W-halo.
        Lx = (W + 2) * Cin
        Lc = (W + 2) * Cf
        G = np.zeros((3, Lx, Lc), np.float32)
        gb = np.zeros((Lc,), np.float32)
        for v in range(1, W + 1):                     # valid output cols (w_out = v-1)
            gb[v * Cf:(v + 1) * Cf] = bf
            for dh in range(3):
                for dw in range(3):
                    u = (v - 1) + dw                  # input col w_in = u-1 = w_out+dw-1
                    G[dh, u * Cin:(u + 1) * Cin, v * Cf:(v + 1) * Cf] = wf[dh, dw]

        # RPN 3x3 conv band matrices: ((W+2)*Cf) -> (W*Cf).
        Lt = W * Cf
        wr = np.transpose(np.asarray(self.rpn_conv_w), (2, 3, 1, 0))    # (3,3,Cf,Cf)
        Rb = np.zeros((3, Lc, Lt), np.float32)
        for w in range(W):
            for dh in range(3):
                for dw in range(3):
                    u = w + dw
                    Rb[dh, u * Cf:(u + 1) * Cf, w * Cf:(w + 1) * Cf] = wr[dh, dw]
        rb = np.tile(np.asarray(self.rpn_conv_b), W)

        # 0/1 shift matrices for the RPN conv's H-halo (row h-1 / row h+1).
        S = np.stack([np.eye(H, k=-1, dtype=np.float32),
                      np.eye(H, k=+1, dtype=np.float32)], 0)

        # Fused (objectness || bbox) 1x1 heads, block-diagonal over w.
        Nh = 5 * A
        Nh_pad = ((Nh + 7) // 8) * 8                  # 16 -> W*Nh_pad = 256 lanes
        wh = np.concatenate([np.asarray(self.rpn_cls_w).reshape(A, Cf),
                             np.asarray(self.rpn_bbox_w).reshape(4 * A, Cf)], 0).T
        bh = np.concatenate([np.asarray(self.rpn_cls_b), np.asarray(self.rpn_bbox_b)], 0)
        Lh = W * Nh_pad
        Hd = np.zeros((Lt, Lh), np.float32)
        hb = np.zeros((Lh,), np.float32)
        for w in range(W):
            Hd[w * Cf:(w + 1) * Cf, w * Nh_pad:w * Nh_pad + Nh] = wh
            hb[w * Nh_pad:w * Nh_pad + Nh] = bh

        # ROI heads: GAP folded into fc1 (colsum @ PW1); cls||bbox lane-padded to 128.
        PW1 = np.tile(np.asarray(self.fc1_w) / float(H * W), (W + 2, 1))  # (Lc, rep)
        w2 = np.concatenate([np.asarray(self.cls_w), np.asarray(self.bbox_w)], 1)
        b2 = np.concatenate([np.asarray(self.cls_b), np.asarray(self.bbox_b)], 0)
        nroi_pad = 128
        w2p = np.zeros((self.rep_size, nroi_pad), np.float32)
        w2p[:, :w2.shape[1]] = w2
        b2p = np.zeros((nroi_pad,), np.float32)
        b2p[:b2.shape[0]] = b2

        self.Lx, self.Lc, self.Lt, self.Lh = Lx, Lc, Lt, Lh
        self.nh_pad, self.nroi_pad = Nh_pad, nroi_pad
        self.G = jnp.asarray(G, jnp.bfloat16)
        self.gb = jnp.asarray(gb[None, :], jnp.float32)
        self.S = jnp.asarray(S, jnp.bfloat16)
        self.Rb = jnp.asarray(Rb, jnp.bfloat16)
        self.rb = jnp.asarray(rb[None, :], jnp.float32)
        self.Hd = jnp.asarray(Hd, jnp.bfloat16)
        self.hb = jnp.asarray(hb[None, :], jnp.float32)
        self.PW1 = jnp.asarray(PW1, jnp.bfloat16)
        self.b1 = jnp.asarray(np.asarray(self.fc1_b)[None, :], jnp.float32)
        self.W2 = jnp.asarray(w2p, jnp.bfloat16)
        self.b2 = jnp.asarray(b2p[None, :], jnp.float32)

    # ---- single fused pallas_call ----
    def _run_fused(self, x2d):
        B = x2d.shape[0]
        H = self.H
        Lx, Lc, Lt, Lh = self.Lx, self.Lc, self.Lt, self.Lh
        rep, nroi = self.rep_size, self.nroi_pad
        kern = functools.partial(_fused_rcnn_kernel, H=H)
        return pl.pallas_call(
            kern,
            grid=(B,),
            out_shape=(jax.ShapeDtypeStruct((B, H, Lh), jnp.float32),
                       jax.ShapeDtypeStruct((B, 1, nroi), jnp.float32)),
            in_specs=[
                pl.BlockSpec((1, H + 2, Lx), lambda i: (i, 0, 0)),   # image rows (f32)
                pl.BlockSpec((3, Lx, Lc), lambda i: (0, 0, 0)),      # backbone bands
                pl.BlockSpec((1, Lc), lambda i: (0, 0)),             # backbone bias
                pl.BlockSpec((2, H, H), lambda i: (0, 0, 0)),        # row shift mats
                pl.BlockSpec((3, Lc, Lt), lambda i: (0, 0, 0)),      # rpn conv bands
                pl.BlockSpec((1, Lt), lambda i: (0, 0)),             # rpn conv bias
                pl.BlockSpec((Lt, Lh), lambda i: (0, 0)),            # rpn 1x1 heads
                pl.BlockSpec((1, Lh), lambda i: (0, 0)),             # rpn head bias
                pl.BlockSpec((Lc, rep), lambda i: (0, 0)),           # GAP+fc1 fold
                pl.BlockSpec((1, rep), lambda i: (0, 0)),            # fc1 bias
                pl.BlockSpec((rep, nroi), lambda i: (0, 0)),         # cls||bbox fc
                pl.BlockSpec((1, nroi), lambda i: (0, 0)),           # cls||bbox bias
            ],
            out_specs=(pl.BlockSpec((1, H, Lh), lambda i: (i, 0, 0)),
                       pl.BlockSpec((1, 1, nroi), lambda i: (i, 0, 0))),
            compiler_params=pltpu.CompilerParams(
                dimension_semantics=("parallel",),
                vmem_limit_bytes=32 * 1024 * 1024,
            ),
        )(x2d, self.G, self.gb, self.S, self.Rb, self.rb,
          self.Hd, self.hb, self.PW1, self.b1, self.W2, self.b2)

    def forward(self, images):
        """images: [B, 3, H, W] float32 NCHW (inference path -> detections dict)."""
        B, C, H, W = images.shape
        assert (H, W) == (self.H, self.W) and C == 3

        # Layout plumbing only: NCHW -> lane-dense (B, H+2, (W+2)*Cin) rows with a
        # per-channel-mean halo (makes the folded normalization exact).
        x_nhwc = jnp.transpose(images, (0, 2, 3, 1))
        fill = jnp.broadcast_to(self.image_mean, (B, H + 2, W + 2, C))
        xpad = jax.lax.dynamic_update_slice(fill, x_nhwc, (0, 1, 1, 0))
        x2d = xpad.reshape(B, H + 2, (W + 2) * C)

        rpn2d, roi = self._run_fused(x2d)

        A = self.num_anchors
        heads = rpn2d.reshape(B, H, W, self.nh_pad)
        rpn_objectness = jnp.transpose(heads[..., :A], (0, 3, 1, 2))
        rpn_box_deltas = jnp.transpose(heads[..., A:5 * A], (0, 3, 1, 2))

        roi = roi.reshape(B, -1)
        class_logits = roi[:, :self.n_cls]
        box_regression = roi[:, self.n_cls:5 * self.n_cls]

        return {
            "rpn_objectness": rpn_objectness,
            "rpn_box_deltas": rpn_box_deltas,
            "class_logits": class_logits,
            "box_regression": box_regression,
        }


# ----------------------------------------------------------------------------
if __name__ == "__main__":
    key = jax.random.PRNGKey(0)
    k_img, k_model = jax.random.split(key)

    B, C, H, W = 2, 3, 16, 16
    images = jax.random.uniform(k_img, (B, C, H, W), jnp.float32)

    model = GeneralizedRCNNPallas(k_model, image_hw=(H, W), is_double_backbone=True)
    fwd = jax.jit(model.forward)
    out = fwd(images)
    out = jax.tree_util.tree_map(jax.block_until_ready, out)

    assert out["rpn_objectness"].shape == (B, 3, H, W)
    assert out["rpn_box_deltas"].shape == (B, 12, H, W)
    assert out["class_logits"].shape == (B, 5)
    assert out["box_regression"].shape == (B, 20)
    assert all(bool(jnp.all(jnp.isfinite(v))) for v in out.values())
    print("KERNEL_OK")
</pallas_src>

<mosaic_0001>
module attributes {stable_mosaic.version = 11 : i64} {
  func.func @_fused_rcnn_kernel(%arg0: i32, %arg1: memref<1x18x54xf32, #tpu.memory_space<vmem>>, %arg2: memref<3x54x288xbf16, #tpu.memory_space<vmem>>, %arg3: memref<1x288xf32, #tpu.memory_space<vmem>>, %arg4: memref<2x16x16xbf16, #tpu.memory_space<vmem>>, %arg5: memref<3x288x256xbf16, #tpu.memory_space<vmem>>, %arg6: memref<1x256xf32, #tpu.memory_space<vmem>>, %arg7: memref<256x256xbf16, #tpu.memory_space<vmem>>, %arg8: memref<1x256xf32, #tpu.memory_space<vmem>>, %arg9: memref<288x32xbf16, #tpu.memory_space<vmem>>, %arg10: memref<1x32xf32, #tpu.memory_space<vmem>>, %arg11: memref<32x128xbf16, #tpu.memory_space<vmem>>, %arg12: memref<1x128xf32, #tpu.memory_space<vmem>>, %arg13: memref<1x16x256xf32, #tpu.memory_space<vmem>>, %arg14: memref<1x1x128xf32, #tpu.memory_space<vmem>>) attributes {dimension_semantics = [#tpu.dimension_semantics<parallel>], iteration_bounds = array<i64: 2>, scalar_prefetch = 0 : i64, scratch_operands = 0 : i64, tpu.core_type = #tpu.core_type<tc>, window_params = [{transform_indices = @transform_0, window_bounds = array<i64: 1, 18, 54>}, {pipeline_mode = #tpu.pipeline_mode<synchronous>, transform_indices = @transform_1, window_bounds = array<i64: 3, 54, 288>}, {pipeline_mode = #tpu.pipeline_mode<synchronous>, transform_indices = @transform_2, window_bounds = array<i64: 1, 288>}, {pipeline_mode = #tpu.pipeline_mode<synchronous>, transform_indices = @transform_3, window_bounds = array<i64: 2, 16, 16>}, {pipeline_mode = #tpu.pipeline_mode<synchronous>, transform_indices = @transform_4, window_bounds = array<i64: 3, 288, 256>}, {pipeline_mode = #tpu.pipeline_mode<synchronous>, transform_indices = @transform_5, window_bounds = array<i64: 1, 256>}, {pipeline_mode = #tpu.pipeline_mode<synchronous>, transform_indices = @transform_6, window_bounds = array<i64: 256, 256>}, {pipeline_mode = #tpu.pipeline_mode<synchronous>, transform_indices = @transform_7, window_bounds = array<i64: 1, 256>}, {pipeline_mode = #tpu.pipeline_mode<synchronous>, transform_indices = @transform_8, window_bounds = array<i64: 288, 32>}, {pipeline_mode = #tpu.pipeline_mode<synchronous>, transform_indices = @transform_9, window_bounds = array<i64: 1, 32>}, {pipeline_mode = #tpu.pipeline_mode<synchronous>, transform_indices = @transform_10, window_bounds = array<i64: 32, 128>}, {pipeline_mode = #tpu.pipeline_mode<synchronous>, transform_indices = @transform_11, window_bounds = array<i64: 1, 128>}, {transform_indices = @transform_12, window_bounds = array<i64: 1, 16, 256>}, {transform_indices = @transform_13, window_bounds = array<i64: 1, 1, 128>}]} {
    %c0 = arith.constant 0 : index
    %c0_0 = arith.constant 0 : index
    %c0_1 = arith.constant 0 : index
    %0 = vector.load %arg1[%c0, %c0_0, %c0_1] : memref<1x18x54xf32, #tpu.memory_space<vmem>>, vector<1x18x54xf32>
    %1 = vector.shape_cast %0 : vector<1x18x54xf32> to vector<18x54xf32>
    %2 = vector.extract_strided_slice %1 {offsets = [0, 0], sizes = [16, 54], strides = [1, 1]} : vector<18x54xf32> to vector<16x54xf32>
    %3 = arith.truncf %2 : vector<16x54xf32> to vector<16x54xbf16>
    %c0_2 = arith.constant 0 : index
    %c0_3 = arith.constant 0 : index
    %c0_4 = arith.constant 0 : index
    %4 = vector.load %arg2[%c0_2, %c0_3, %c0_4] : memref<3x54x288xbf16, #tpu.memory_space<vmem>>, vector<1x54x288xbf16>
    %5 = vector.shape_cast %4 : vector<1x54x288xbf16> to vector<54x288xbf16>
    %cst = arith.constant dense<0.000000e+00> : vector<16x288xf32>
    %6 = tpu.matmul %3, %5, %cst {dimension_numbers = #tpu.dot_dimension_numbers<[1], [0], [0], [1], [0, 0, 1, 1], [], []>} : vector<16x54xbf16>, vector<54x288xbf16>, vector<16x288xf32> -> vector<16x288xf32>
    %7 = vector.extract_strided_slice %1 {offsets = [1, 0], sizes = [16, 54], strides = [1, 1]} : vector<18x54xf32> to vector<16x54xf32>
    %8 = arith.truncf %7 : vector<16x54xf32> to vector<16x54xbf16>
    %c1 = arith.constant 1 : index
    %c0_5 = arith.constant 0 : index
    %c0_6 = arith.constant 0 : index
    %9 = vector.load %arg2[%c1, %c0_5, %c0_6] : memref<3x54x288xbf16, #tpu.memory_space<vmem>>, vector<1x54x288xbf16>
    %10 = vector.shape_cast %9 : vector<1x54x288xbf16> to vector<54x288xbf16>
    %cst_7 = arith.constant dense<0.000000e+00> : vector<16x288xf32>
    %11 = tpu.matmul %8, %10, %cst_7 {dimension_numbers = #tpu.dot_dimension_numbers<[1], [0], [0], [1], [0, 0, 1, 1], [], []>} : vector<16x54xbf16>, vector<54x288xbf16>, vector<16x288xf32> -> vector<16x288xf32>
    %12 = arith.addf %6, %11 : vector<16x288xf32>
    %13 = vector.extract_strided_slice %1 {offsets = [2, 0], sizes = [16, 54], strides = [1, 1]} : vector<18x54xf32> to vector<16x54xf32>
    %14 = arith.truncf %13 : vector<16x54xf32> to vector<16x54xbf16>
    %c2 = arith.constant 2 : index
    %c0_8 = arith.constant 0 : index
    %c0_9 = arith.constant 0 : index
    %15 = vector.load %arg2[%c2, %c0_8, %c0_9] : memref<3x54x288xbf16, #tpu.memory_space<vmem>>, vector<1x54x288xbf16>
    %16 = vector.shape_cast %15 : vector<1x54x288xbf16> to vector<54x288xbf16>
    %cst_10 = arith.constant dense<0.000000e+00> : vector<16x288xf32>
    %17 = tpu.matmul %14, %16, %cst_10 {dimension_numbers = #tpu.dot_dimension_numbers<[1], [0], [0], [1], [0, 0, 1, 1], [], []>} : vector<16x54xbf16>, vector<54x288xbf16>, vector<16x288xf32> -> vector<16x288xf32>
    %18 = arith.addf %12, %17 : vector<16x288xf32>
    %c0_11 = arith.constant 0 : index
    %c0_12 = arith.constant 0 : index
    %19 = vector.load %arg3[%c0_11, %c0_12] : memref<1x288xf32, #tpu.memory_space<vmem>>, vector<1x288xf32>
    %20 = vector.broadcast %19 : vector<1x288xf32> to vector<16x288xf32>
    %21 = arith.addf %18, %20 : vector<16x288xf32>
    %cst_13 = arith.constant 0.000000e+00 : f32
    %22 = vector.broadcast %cst_13 : f32 to vector<16x288xf32>
    %23 = arith.maximumf %21, %22 : vector<16x288xf32>
    %24 = arith.truncf %23 : vector<16x288xf32> to vector<16x288xbf16>
    %cst_14 = arith.constant dense<0.000000e+00> : vector<288xf32>
    %25 = vector.multi_reduction <add>, %23, %cst_14 [0] : vector<16x288xf32> to vector<288xf32>
    %26 = vector.shape_cast %25 : vector<288xf32> to vector<1x288xf32>
    %27 = arith.truncf %26 : vector<1x288xf32> to vector<1x288xbf16>
    %c0_15 = arith.constant 0 : index
    %c0_16 = arith.constant 0 : index
    %28 = vector.load %arg9[%c0_15, %c0_16] : memref<288x32xbf16, #tpu.memory_space<vmem>>, vector<288x32xbf16>
    %cst_17 = arith.constant dense<0.000000e+00> : vector<1x32xf32>
    %29 = tpu.matmul %27, %28, %cst_17 {dimension_numbers = #tpu.dot_dimension_numbers<[1], [0], [0], [1], [0, 0, 1, 1], [], []>} : vector<1x288xbf16>, vector<288x32xbf16>, vector<1x32xf32> -> vector<1x32xf32>
    %c0_18 = arith.constant 0 : index
    %c0_19 = arith.constant 0 : index
    %30 = vector.load %arg10[%c0_18, %c0_19] : memref<1x32xf32, #tpu.memory_space<vmem>>, vector<1x32xf32>
    %31 = arith.addf %29, %30 : vector<1x32xf32>
    %cst_20 = arith.constant 0.000000e+00 : f32
    %32 = vector.broadcast %cst_20 : f32 to vector<1x32xf32>
    %33 = arith.maximumf %31, %32 : vector<1x32xf32>
    %34 = arith.truncf %33 : vector<1x32xf32> to vector<1x32xbf16>
    %c0_21 = arith.constant 0 : index
    %c0_22 = arith.constant 0 : index
    %35 = vector.load %arg11[%c0_21, %c0_22] : memref<32x128xbf16, #tpu.memory_space<vmem>>, vector<32x128xbf16>
    %cst_23 = arith.constant dense<0.000000e+00> : vector<1x128xf32>
    %36 = tpu.matmul %34, %35, %cst_23 {dimension_numbers = #tpu.dot_dimension_numbers<[1], [0], [0], [1], [0, 0, 1, 1], [], []>} : vector<1x32xbf16>, vector<32x128xbf16>, vector<1x128xf32> -> vector<1x128xf32>
    %c0_24 = arith.constant 0 : index
    %c0_25 = arith.constant 0 : index
    %37 = vector.load %arg12[%c0_24, %c0_25] : memref<1x128xf32, #tpu.memory_space<vmem>>, vector<1x128xf32>
    %38 = arith.addf %36, %37 : vector<1x128xf32>
    %c0_26 = arith.constant 0 : index
    %c0_27 = arith.constant 0 : index
    %c0_28 = arith.constant 0 : index
    %39 = vector.load %arg14[%c0_26, %c0_27, %c0_28] : memref<1x1x128xf32, #tpu.memory_space<vmem>>, vector<1x1x128xf32>
    %40 = vector.shape_cast %39 : vector<1x1x128xf32> to vector<1x128xf32>
    %41 = vector.shape_cast %38 : vector<1x128xf32> to vector<1x1x128xf32>
    tpu.vector_store %arg14[%c0_26, %c0_27, %c0_28], %41 {strides = array<i32>} : memref<1x1x128xf32, #tpu.memory_space<vmem>>, vector<1x1x128xf32>,
    %c0_29 = arith.constant 0 : index
    %c0_30 = arith.constant 0 : index
    %c0_31 = arith.constant 0 : index
    %42 = vector.load %arg4[%c0_29, %c0_30, %c0_31] : memref<2x16x16xbf16, #tpu.memory_space<vmem>>, vector<1x16x16xbf16>
    %43 = vector.shape_cast %42 : vector<1x16x16xbf16> to vector<16x16xbf16>
    %cst_32 = arith.constant dense<0.000000e+00> : vector<16x288xf32>
    %44 = tpu.matmul %43, %24, %cst_32 {dimension_numbers = #tpu.dot_dimension_numbers<[1], [0], [0], [1], [0, 0, 1, 1], [], []>} : vector<16x16xbf16>, vector<16x288xbf16>, vector<16x288xf32> -> vector<16x288xf32>
    %45 = arith.truncf %44 : vector<16x288xf32> to vector<16x288xbf16>
    %c1_33 = arith.constant 1 : index
    %c0_34 = arith.constant 0 : index
    %c0_35 = arith.constant 0 : index
    %46 = vector.load %arg4[%c1_33, %c0_34, %c0_35] : memref<2x16x16xbf16, #tpu.memory_space<vmem>>, vector<1x16x16xbf16>
    %47 = vector.shape_cast %46 : vector<1x16x16xbf16> to vector<16x16xbf16>
    %cst_36 = arith.constant dense<0.000000e+00> : vector<16x288xf32>
    %48 = tpu.matmul %47, %24, %cst_36 {dimension_numbers = #tpu.dot_dimension_numbers<[1], [0], [0], [1], [0, 0, 1, 1], [], []>} : vector<16x16xbf16>, vector<16x288xbf16>, vector<16x288xf32> -> vector<16x288xf32>
    %49 = arith.truncf %48 : vector<16x288xf32> to vector<16x288xbf16>
    %c0_37 = arith.constant 0 : index
    %c0_38 = arith.constant 0 : index
    %c0_39 = arith.constant 0 : index
    %50 = vector.load %arg5[%c0_37, %c0_38, %c0_39] : memref<3x288x256xbf16, #tpu.memory_space<vmem>>, vector<1x288x256xbf16>
    %51 = vector.shape_cast %50 : vector<1x288x256xbf16> to vector<288x256xbf16>
    %cst_40 = arith.constant dense<0.000000e+00> : vector<16x256xf32>
    %52 = tpu.matmul %45, %51, %cst_40 {dimension_numbers = #tpu.dot_dimension_numbers<[1], [0], [0], [1], [0, 0, 1, 1], [], []>} : vector<16x288xbf16>, vector<288x256xbf16>, vector<16x256xf32> -> vector<16x256xf32>
    %c1_41 = arith.constant 1 : index
    %c0_42 = arith.constant 0 : index
    %c0_43 = arith.constant 0 : index
    %53 = vector.load %arg5[%c1_41, %c0_42, %c0_43] : memref<3x288x256xbf16, #tpu.memory_space<vmem>>, vector<1x288x256xbf16>
    %54 = vector.shape_cast %53 : vector<1x288x256xbf16> to vector<288x256xbf16>
    %cst_44 = arith.constant dense<0.000000e+00> : vector<16x256xf32>
    %55 = tpu.matmul %24, %54, %cst_44 {dimension_numbers = #tpu.dot_dimension_numbers<[1], [0], [0], [1], [0, 0, 1, 1], [], []>} : vector<16x288xbf16>, vector<288x256xbf16>, vector<16x256xf32> -> vector<16x256xf32>
    %56 = arith.addf %52, %55 : vector<16x256xf32>
    %c2_45 = arith.constant 2 : index
    %c0_46 = arith.constant 0 : index
    %c0_47 = arith.constant 0 : index
    %57 = vector.load %arg5[%c2_45, %c0_46, %c0_47] : memref<3x288x256xbf16, #tpu.memory_space<vmem>>, vector<1x288x256xbf16>
    %58 = vector.shape_cast %57 : vector<1x288x256xbf16> to vector<288x256xbf16>
    %cst_48 = arith.constant dense<0.000000e+00> : vector<16x256xf32>
    %59 = tpu.matmul %49, %58, %cst_48 {dimension_numbers = #tpu.dot_dimension_numbers<[1], [0], [0], [1], [0, 0, 1, 1], [], []>} : vector<16x288xbf16>, vector<288x256xbf16>, vector<16x256xf32> -> vector<16x256xf32>
    %60 = arith.addf %56, %59 : vector<16x256xf32>
    %c0_49 = arith.constant 0 : index
    %c0_50 = arith.constant 0 : index
    %61 = vector.load %arg6[%c0_49, %c0_50] : memref<1x256xf32, #tpu.memory_space<vmem>>, vector<1x256xf32>
    %62 = vector.broadcast %61 : vector<1x256xf32> to vector<16x256xf32>
    %63 = arith.addf %60, %62 : vector<16x256xf32>
    %cst_51 = arith.constant 0.000000e+00 : f32
    %64 = vector.broadcast %cst_51 : f32 to vector<16x256xf32>
    %65 = arith.maximumf %63, %64 : vector<16x256xf32>
    %66 = arith.truncf %65 : vector<16x256xf32> to vector<16x256xbf16>
    %c0_52 = arith.constant 0 : index
    %c0_53 = arith.constant 0 : index
    %67 = vector.load %arg7[%c0_52, %c0_53] : memref<256x256xbf16, #tpu.memory_space<vmem>>, vector<256x256xbf16>
    %cst_54 = arith.constant dense<0.000000e+00> : vector<16x256xf32>
    %68 = tpu.matmul %66, %67, %cst_54 {dimension_numbers = #tpu.dot_dimension_numbers<[1], [0], [0], [1], [0, 0, 1, 1], [], []>} : vector<16x256xbf16>, vector<256x256xbf16>, vector<16x256xf32> -> vector<16x256xf32>
    %c0_55 = arith.constant 0 : index
    %c0_56 = arith.constant 0 : index
    %69 = vector.load %arg8[%c0_55, %c0_56] : memref<1x256xf32, #tpu.memory_space<vmem>>, vector<1x256xf32>
    %70 = vector.broadcast %69 : vector<1x256xf32> to vector<16x256xf32>
    %71 = arith.addf %68, %70 : vector<16x256xf32>
    %c0_57 = arith.constant 0 : index
    %c0_58 = arith.constant 0 : index
    %c0_59 = arith.constant 0 : index
    %72 = vector.load %arg13[%c0_57, %c0_58, %c0_59] : memref<1x16x256xf32, #tpu.memory_space<vmem>>, vector<1x16x256xf32>
    %73 = vector.shape_cast %72 : vector<1x16x256xf32> to vector<16x256xf32>
    %74 = vector.shape_cast %71 : vector<16x256xf32> to vector<1x16x256xf32>
    tpu.vector_store %arg13[%c0_57, %c0_58, %c0_59], %74 {strides = array<i32>} : memref<1x16x256xf32, #tpu.memory_space<vmem>>, vector<1x16x256xf32>,
    return
  }
  func.func @transform_0(%arg0: i32) -> (i32, i32, i32) {
    %c0_i32 = arith.constant 0 : i32
    %c0_i32_0 = arith.constant 0 : i32
    %c0_i32_1 = arith.constant 0 : i32
    return %arg0, %c0_i32, %c0_i32_0 : i32, i32, i32
  }
  func.func @transform_1(%arg0: i32) -> (i32, i32, i32) {
    %c0_i32 = arith.constant 0 : i32
    %c0_i32_0 = arith.constant 0 : i32
    %c0_i32_1 = arith.constant 0 : i32
    %c0_i32_2 = arith.constant 0 : i32
    return %c0_i32, %c0_i32_0, %c0_i32_1 : i32, i32, i32
  }
  func.func @transform_2(%arg0: i32) -> (i32, i32) {
    %c0_i32 = arith.constant 0 : i32
    %c0_i32_0 = arith.constant 0 : i32
    %c0_i32_1 = arith.constant 0 : i32
    return %c0_i32, %c0_i32_0 : i32, i32
  }
  func.func @transform_3(%arg0: i32) -> (i32, i32, i32) {
    %c0_i32 = arith.constant 0 : i32
    %c0_i32_0 = arith.constant 0 : i32
    %c0_i32_1 = arith.constant 0 : i32
    %c0_i32_2 = arith.constant 0 : i32
    return %c0_i32, %c0_i32_0, %c0_i32_1 : i32, i32, i32
  }
  func.func @transform_4(%arg0: i32) -> (i32, i32, i32) {
    %c0_i32 = arith.constant 0 : i32
    %c0_i32_0 = arith.constant 0 : i32
    %c0_i32_1 = arith.constant 0 : i32
    %c0_i32_2 = arith.constant 0 : i32
    return %c0_i32, %c0_i32_0, %c0_i32_1 : i32, i32, i32
  }
  func.func @transform_5(%arg0: i32) -> (i32, i32) {
    %c0_i32 = arith.constant 0 : i32
    %c0_i32_0 = arith.constant 0 : i32
    %c0_i32_1 = arith.constant 0 : i32
    return %c0_i32, %c0_i32_0 : i32, i32
  }
  func.func @transform_6(%arg0: i32) -> (i32, i32) {
    %c0_i32 = arith.constant 0 : i32
    %c0_i32_0 = arith.constant 0 : i32
    %c0_i32_1 = arith.constant 0 : i32
    return %c0_i32, %c0_i32_0 : i32, i32
  }
  func.func @transform_7(%arg0: i32) -> (i32, i32) {
    %c0_i32 = arith.constant 0 : i32
    %c0_i32_0 = arith.constant 0 : i32
    %c0_i32_1 = arith.constant 0 : i32
    return %c0_i32, %c0_i32_0 : i32, i32
  }
  func.func @transform_8(%arg0: i32) -> (i32, i32) {
    %c0_i32 = arith.constant 0 : i32
    %c0_i32_0 = arith.constant 0 : i32
    %c0_i32_1 = arith.constant 0 : i32
    return %c0_i32, %c0_i32_0 : i32, i32
  }
  func.func @transform_9(%arg0: i32) -> (i32, i32) {
    %c0_i32 = arith.constant 0 : i32
    %c0_i32_0 = arith.constant 0 : i32
    %c0_i32_1 = arith.constant 0 : i32
    return %c0_i32, %c0_i32_0 : i32, i32
  }
  func.func @transform_10(%arg0: i32) -> (i32, i32) {
    %c0_i32 = arith.constant 0 : i32
    %c0_i32_0 = arith.constant 0 : i32
    %c0_i32_1 = arith.constant 0 : i32
    return %c0_i32, %c0_i32_0 : i32, i32
  }
  func.func @transform_11(%arg0: i32) -> (i32, i32) {
    %c0_i32 = arith.constant 0 : i32
    %c0_i32_0 = arith.constant 0 : i32
    %c0_i32_1 = arith.constant 0 : i32
    return %c0_i32, %c0_i32_0 : i32, i32
  }
  func.func @transform_12(%arg0: i32) -> (i32, i32, i32) {
    %c0_i32 = arith.constant 0 : i32
    %c0_i32_0 = arith.constant 0 : i32
    %c0_i32_1 = arith.constant 0 : i32
    return %arg0, %c0_i32, %c0_i32_0 : i32, i32, i32
  }
  func.func @transform_13(%arg0: i32) -> (i32, i32, i32) {
    %c0_i32 = arith.constant 0 : i32
    %c0_i32_0 = arith.constant 0 : i32
    %c0_i32_1 = arith.constant 0 : i32
    return %arg0, %c0_i32, %c0_i32_0 : i32, i32, i32
  }
}

</mosaic_0001>

<llo_original>
// kernel: forward.1
$region0: #{forward.1}
  #allocation0 [shape = 'u32[]', space=smem, size = 0x4, offset = 0x4, fixed_abs, tag = 'smem constant byte address 0x4 - core index']
  #allocation1 [shape = 'u32[144,128]{1,0:T(1,128)}', space=vmem, size = 0x12000, scoped, tag = 'internal scratch']
  %s0 = inlined_call_operand.vmem [shape: f32[2,18,54], index: 0, kind: input, shape index: {}]
  %s1 = inlined_call_operand.vmem [shape: bf16[3,54,288], index: 1, kind: input, shape index: {}]
  %s2 = inlined_call_operand.vmem [shape: f32[1,288], index: 2, kind: input, shape index: {}]
  %s3 = inlined_call_operand.vmem [shape: bf16[2,16,16], index: 3, kind: input, shape index: {}]
  %s4 = inlined_call_operand.vmem [shape: bf16[3,288,256], index: 4, kind: input, shape index: {}]
  %s5 = inlined_call_operand.vmem [shape: f32[1,256], index: 5, kind: input, shape index: {}, may-alias: {5,7}]
  %s6 = inlined_call_operand.vmem [shape: bf16[256,256], index: 6, kind: input, shape index: {}]
  %s7 = inlined_call_operand.vmem [shape: f32[1,256], index: 7, kind: input, shape index: {}, may-alias: {5,7}]
  %s8 = inlined_call_operand.vmem [shape: bf16[288,32], index: 8, kind: input, shape index: {}]
  %s9 = inlined_call_operand.vmem [shape: f32[1,32], index: 9, kind: input, shape index: {}]
  %s10 = inlined_call_operand.vmem [shape: bf16[32,128], index: 10, kind: input, shape index: {}]
  %s11 = inlined_call_operand.vmem [shape: f32[1,128], index: 11, kind: input, shape index: {}]
  %s12 = inlined_call_operand.vmem [shape: f32[2,16,256], index: 12, kind: output, shape index: {0}]
  %s13 = inlined_call_operand.vmem [shape: f32[2,1,128], index: 13, kind: output, shape index: {1}]
  %14 = xla_tuple %s12, %s13
  %s15 = sld [smem:[#allocation0]]
  $region89: #{forward.1} parent=0
    _
  %s17 = ssub.s32 1, %s15
  %s18 = scalar_select 0, %s17, %s15
  loop: start=0, step=1, limit=4
  $region2: #{forward.1} parent=0 // loop_pre_header
    _
  $region3: #{forward.1} parent=0 // loop_header
    %s20 = sphi 0, %s24
    %p21 = scmp.ge.s32.totalorder %s20, 4
    %s30 = sphi 0, %s32
    %s33 = sphi 0, %s30
    %s34 = sphi 0, %s33
    %s50 = sphi 0, %s34
    %s54 = sphi 0, %s54
    %s56 = sphi 0, %s54
    %s57 = sphi 0, %s56
    %s71 = sphi 0, %s57
    %s75 = sphi 0, %s75
    %s77 = sphi 0, %s75
    %s78 = sphi 0, %s77
    %s92 = sphi 0, %s78
    %s96 = sphi 0, %s96
    %s98 = sphi 0, %s96
    %s99 = sphi 0, %s98
    %s113 = sphi 0, %s99
    %s117 = sphi 0, %s117
    %s119 = sphi 0, %s117
    %s120 = sphi 0, %s119
    %s134 = sphi 0, %s120
    %s138 = sphi 0, %s138
    %s140 = sphi 0, %s138
    %s141 = sphi 0, %s140
    %s155 = sphi 0, %s141
    %s159 = sphi 0, %s159
    %s161 = sphi 0, %s159
    %s162 = sphi 0, %s161
    %s176 = sphi 0, %s162
    %s180 = sphi 0, %s180
    %s182 = sphi 0, %s180
    %s183 = sphi 0, %s182
    %s197 = sphi 0, %s183
    %s201 = sphi 0, %s201
    %s203 = sphi 0, %s201
    %s204 = sphi 0, %s203
    %s218 = sphi 0, %s204
    %s222 = sphi 0, %s222
    %s224 = sphi 0, %s222
    %s225 = sphi 0, %s224
    %s239 = sphi 0, %s225
    %s243 = sphi 0, %s243
    %s245 = sphi 0, %s243
    %s246 = sphi 0, %s245
    %s260 = sphi 0, %s246
    %s264 = sphi 0, %s264
    %s266 = sphi 0, %s264
    %s267 = sphi 0, %s266
    %s281 = sphi 0, %s267
    %s287 = sphi 0, %s289
    %s290 = sphi 0, %s287
    %s291 = sphi 0, %s290
    %s307 = sphi 0, %s291
    %s313 = sphi 0, %s315
    %s316 = sphi 0, %s313
    %s317 = sphi 0, %s316
    %s333 = sphi 0, %s317
  $region4: #{forward.1} parent=0 // loop_header_branch
    %23 = sbr.rel (%p21) target = $region8
  $region5: #{forward.1} parent=0 // loop_body
    %s25 = ssub.s32 %s20, 1
    %s26 = ssub.s32 %s20, 2
    %s27 = sadd.s32 %s20, 1
    %s28 = ssub.s32 %s20, %s27
    %p29 = scmp.eq.s32.totalorder %s28, 0
    %s31 = sadd.s32 %s30, 1
    %s32 = scalar_select %p29, %s30, %s31
    %p35 = pneg %p29
    %p36 = scmp.eq.s32.totalorder %s20, 1
    %p37 = por %p35, %p36
    %p38 = scmp.ne.s32.totalorder %s30, %s33
    %p39 = scmp.eq.s32.totalorder %s20, 0
    %p40 = por %p38, %p39
    %p41 = scmp.ne.s32.totalorder %s30, %s33
    %p42 = scmp.eq.s32.totalorder %s25, 1
    %p43 = por %p41, %p42
    %p44 = scmp.ne.s32.totalorder %s33, %s34
    %p45 = scmp.eq.s32.totalorder %s25, 0
    %p46 = por %p44, %p45
    %p47 = scmp.ne.s32.totalorder %s33, %s34
    %p48 = scmp.eq.s32.totalorder %s26, 1
    %p49 = por %p47, %p48
    %p51 = scmp.ne.s32.totalorder %s34, %s50
    %p52 = scmp.eq.s32.totalorder %s26, 0
    %p53 = por %p51, %p52
    %s55 = sadd.s32 %s54, 1
    %p58 = scmp.eq.s32.totalorder %s20, 1
    %p59 = scmp.ne.s32.totalorder %s54, %s56
    %p60 = scmp.eq.s32.totalorder %s20, 0
    %p61 = por %p59, %p60
    %p62 = scmp.ne.s32.totalorder %s54, %s56
    %p63 = scmp.eq.s32.totalorder %s25, 1
    %p64 = por %p62, %p63
    %p65 = scmp.ne.s32.totalorder %s56, %s57
    %p66 = scmp.eq.s32.totalorder %s25, 0
    %p67 = por %p65, %p66
    %p68 = scmp.ne.s32.totalorder %s56, %s57
    %p69 = scmp.eq.s32.totalorder %s26, 1
    %p70 = por %p68, %p69
    %p72 = scmp.ne.s32.totalorder %s57, %s71
    %p73 = scmp.eq.s32.totalorder %s26, 0
    %p74 = por %p72, %p73
    %s76 = sadd.s32 %s75, 1
    %p79 = scmp.eq.s32.totalorder %s20, 1
    %p80 = scmp.ne.s32.totalorder %s75, %s77
    %p81 = scmp.eq.s32.totalorder %s20, 0
    %p82 = por %p80, %p81
    %p83 = scmp.ne.s32.totalorder %s75, %s77
    %p84 = scmp.eq.s32.totalorder %s25, 1
    %p85 = por %p83, %p84
    %p86 = scmp.ne.s32.totalorder %s77, %s78
    %p87 = scmp.eq.s32.totalorder %s25, 0
    %p88 = por %p86, %p87
    %p89 = scmp.ne.s32.totalorder %s77, %s78
    %p90 = scmp.eq.s32.totalorder %s26, 1
    %p91 = por %p89, %p90
    %p93 = scmp.ne.s32.totalorder %s78, %s92
    %p94 = scmp.eq.s32.totalorder %s26, 0
    %p95 = por %p93, %p94
    %s97 = sadd.s32 %s96, 1
    %p100 = scmp.eq.s32.totalorder %s20, 1
    %p101 = scmp.ne.s32.totalorder %s96, %s98
    %p102 = scmp.eq.s32.totalorder %s20, 0
    %p103 = por %p101, %p102
    %p104 = scmp.ne.s32.totalorder %s96, %s98
    %p105 = scmp.eq.s32.totalorder %s25, 1
    %p106 = por %p104, %p105
    %p107 = scmp.ne.s32.totalorder %s98, %s99
    %p108 = scmp.eq.s32.totalorder %s25, 0
    %p109 = por %p107, %p108
    %p110 = scmp.ne.s32.totalorder %s98, %s99
    %p111 = scmp.eq.s32.totalorder %s26, 1
    %p112 = por %p110, %p111
    %p114 = scmp.ne.s32.totalorder %s99, %s113
    %p115 = scmp.eq.s32.totalorder %s26, 0
    %p116 = por %p114, %p115
    %s118 = sadd.s32 %s117, 1
    %p121 = scmp.eq.s32.totalorder %s20, 1
    %p122 = scmp.ne.s32.totalorder %s117, %s119
    %p123 = scmp.eq.s32.totalorder %s20, 0
    %p124 = por %p122, %p123
    %p125 = scmp.ne.s32.totalorder %s117, %s119
    %p126 = scmp.eq.s32.totalorder %s25, 1
    %p127 = por %p125, %p126
    %p128 = scmp.ne.s32.totalorder %s119, %s120
    %p129 = scmp.eq.s32.totalorder %s25, 0
    %p130 = por %p128, %p129
    %p131 = scmp.ne.s32.totalorder %s119, %s120
    %p132 = scmp.eq.s32.totalorder %s26, 1
    %p133 = por %p131, %p132
    %p135 = scmp.ne.s32.totalorder %s120, %s134
    %p136 = scmp.eq.s32.totalorder %s26, 0
    %p137 = por %p135, %p136
    %s139 = sadd.s32 %s138, 1
    %p142 = scmp.eq.s32.totalorder %s20, 1
    %p143 = scmp.ne.s32.totalorder %s138, %s140
    %p144 = scmp.eq.s32.totalorder %s20, 0
    %p145 = por %p143, %p144
    %p146 = scmp.ne.s32.totalorder %s138, %s140
    %p147 = scmp.eq.s32.totalorder %s25, 1
    %p148 = por %p146, %p147
    %p149 = scmp.ne.s32.totalorder %s140, %s141
    %p150 = scmp.eq.s32.totalorder %s25, 0
    %p151 = por %p149, %p150
    %p152 = scmp.ne.s32.totalorder %s140, %s141
    %p153 = scmp.eq.s32.totalorder %s26, 1
    %p154 = por %p152, %p153
    %p156 = scmp.ne.s32.totalorder %s141, %s155
    %p157 = scmp.eq.s32.totalorder %s26, 0
    %p158 = por %p156, %p157
    %s160 = sadd.s32 %s159, 1
    %p163 = scmp.eq.s32.totalorder %s20, 1
    %p164 = scmp.ne.s32.totalorder %s159, %s161
    %p165 = scmp.eq.s32.totalorder %s20, 0
    %p166 = por %p164, %p165
    %p167 = scmp.ne.s32.totalorder %s159, %s161
    %p168 = scmp.eq.s32.totalorder %s25, 1
    %p169 = por %p167, %p168
    %p170 = scmp.ne.s32.totalorder %s161, %s162
    %p171 = scmp.eq.s32.totalorder %s25, 0
    %p172 = por %p170, %p171
    %p173 = scmp.ne.s32.totalorder %s161, %s162
    %p174 = scmp.eq.s32.totalorder %s26, 1
    %p175 = por %p173, %p174
    %p177 = scmp.ne.s32.totalorder %s162, %s176
    %p178 = scmp.eq.s32.totalorder %s26, 0
    %p179 = por %p177, %p178
    %s181 = sadd.s32 %s180, 1
    %p184 = scmp.eq.s32.totalorder %s20, 1
    %p185 = scmp.ne.s32.totalorder %s180, %s182
    %p186 = scmp.eq.s32.totalorder %s20, 0
    %p187 = por %p185, %p186
    %p188 = scmp.ne.s32.totalorder %s180, %s182
    %p189 = scmp.eq.s32.totalorder %s25, 1
    %p190 = por %p188, %p189
    %p191 = scmp.ne.s32.totalorder %s182, %s183
    %p192 = scmp.eq.s32.totalorder %s25, 0
    %p193 = por %p191, %p192
    %p194 = scmp.ne.s32.totalorder %s182, %s183
    %p195 = scmp.eq.s32.totalorder %s26, 1
    %p196 = por %p194, %p195
    %p198 = scmp.ne.s32.totalorder %s183, %s197
    %p199 = scmp.eq.s32.totalorder %s26, 0
    %p200 = por %p198, %p199
    %s202 = sadd.s32 %s201, 1
    %p205 = scmp.eq.s32.totalorder %s20, 1
    %p206 = scmp.ne.s32.totalorder %s201, %s203
    %p207 = scmp.eq.s32.totalorder %s20, 0
    %p208 = por %p206, %p207
    %p209 = scmp.ne.s32.totalorder %s201, %s203
    %p210 = scmp.eq.s32.totalorder %s25, 1
    %p211 = por %p209, %p210
    %p212 = scmp.ne.s32.totalorder %s203, %s204
    %p213 = scmp.eq.s32.totalorder %s25, 0
    %p214 = por %p212, %p213
    %p215 = scmp.ne.s32.totalorder %s203, %s204
    %p216 = scmp.eq.s32.totalorder %s26, 1
    %p217 = por %p215, %p216
    %p219 = scmp.ne.s32.totalorder %s204, %s218
    %p220 = scmp.eq.s32.totalorder %s26, 0
    %p221 = por %p219, %p220
    %s223 = sadd.s32 %s222, 1
    %p226 = scmp.eq.s32.totalorder %s20, 1
    %p227 = scmp.ne.s32.totalorder %s222, %s224
    %p228 = scmp.eq.s32.totalorder %s20, 0
    %p229 = por %p227, %p228
    %p230 = scmp.ne.s32.totalorder %s222, %s224
    %p231 = scmp.eq.s32.totalorder %s25, 1
    %p232 = por %p230, %p231
    %p233 = scmp.ne.s32.totalorder %s224, %s225
    %p234 = scmp.eq.s32.totalorder %s25, 0
    %p235 = por %p233, %p234
    %p236 = scmp.ne.s32.totalorder %s224, %s225
    %p237 = scmp.eq.s32.totalorder %s26, 1
    %p238 = por %p236, %p237
    %p240 = scmp.ne.s32.totalorder %s225, %s239
    %p241 = scmp.eq.s32.totalorder %s26, 0
    %p242 = por %p240, %p241
    %s244 = sadd.s32 %s243, 1
    %p247 = scmp.eq.s32.totalorder %s20, 1
    %p248 = scmp.ne.s32.totalorder %s243, %s245
    %p249 = scmp.eq.s32.totalorder %s20, 0
    %p250 = por %p248, %p249
    %p251 = scmp.ne.s32.totalorder %s243, %s245
    %p252 = scmp.eq.s32.totalorder %s25, 1
    %p253 = por %p251, %p252
    %p254 = scmp.ne.s32.totalorder %s245, %s246
    %p255 = scmp.eq.s32.totalorder %s25, 0
    %p256 = por %p254, %p255
    %p257 = scmp.ne.s32.totalorder %s245, %s246
    %p258 = scmp.eq.s32.totalorder %s26, 1
    %p259 = por %p257, %p258
    %p261 = scmp.ne.s32.totalorder %s246, %s260
    %p262 = scmp.eq.s32.totalorder %s26, 0
    %p263 = por %p261, %p262
    %s265 = sadd.s32 %s264, 1
    %p268 = scmp.eq.s32.totalorder %s20, 1
    %p269 = scmp.ne.s32.totalorder %s264, %s266
    %p270 = scmp.eq.s32.totalorder %s20, 0
    %p271 = por %p269, %p270
    %p272 = scmp.ne.s32.totalorder %s264, %s266
    %p273 = scmp.eq.s32.totalorder %s25, 1
    %p274 = por %p272, %p273
    %p275 = scmp.ne.s32.totalorder %s266, %s267
    %p276 = scmp.eq.s32.totalorder %s25, 0
    %p277 = por %p275, %p276
    %p278 = scmp.ne.s32.totalorder %s266, %s267
    %p279 = scmp.eq.s32.totalorder %s26, 1
    %p280 = por %p278, %p279
    %p282 = scmp.ne.s32.totalorder %s267, %s281
    %p283 = scmp.eq.s32.totalorder %s26, 0
    %p284 = por %p282, %p283
    %s285 = ssub.s32 %s20, %s27
    %p286 = scmp.eq.s32.totalorder %s285, 0
    %s288 = sadd.s32 %s287, 1
    %s289 = scalar_select %p286, %s287, %s288
    %p292 = pneg %p286
    %p293 = scmp.eq.s32.totalorder %s20, 1
    %p294 = por %p292, %p293
    %p295 = scmp.ne.s32.totalorder %s287, %s290
    %p296 = scmp.eq.s32.totalorder %s20, 0
    %p297 = por %p295, %p296
    %p298 = scmp.ne.s32.totalorder %s287, %s290
    %p299 = scmp.eq.s32.totalorder %s25, 1
    %p300 = por %p298, %p299
    %p301 = scmp.ne.s32.totalorder %s290, %s291
    %p302 = scmp.eq.s32.totalorder %s25, 0
    %p303 = por %p301, %p302
    %p304 = scmp.ne.s32.totalorder %s290, %s291
    %p305 = scmp.eq.s32.totalorder %s26, 1
    %p306 = por %p304, %p305
    %p308 = scmp.ne.s32.totalorder %s291, %s307
    %p309 = scmp.eq.s32.totalorder %s26, 0
    %p310 = por %p308, %p309
    %s311 = ssub.s32 %s20, %s27
    %p312 = scmp.eq.s32.totalorder %s311, 0
    %s314 = sadd.s32 %s313, 1
    %s315 = scalar_select %p312, %s313, %s314
    %p318 = pneg %p312
    %p319 = scmp.eq.s32.totalorder %s20, 1
    %p320 = por %p318, %p319
    %p321 = scmp.ne.s32.totalorder %s313, %s316
    %p322 = scmp.eq.s32.totalorder %s20, 0
    %p323 = por %p321, %p322
    %p324 = scmp.ne.s32.totalorder %s313, %s316
    %p325 = scmp.eq.s32.totalorder %s25, 1
    %p326 = por %p324, %p325
    %p327 = scmp.ne.s32.totalorder %s316, %s317
    %p328 = scmp.eq.s32.totalorder %s25, 0
    %p329 = por %p327, %p328
    %p330 = scmp.ne.s32.totalorder %s316, %s317
    %p331 = scmp.eq.s32.totalorder %s26, 1
    %p332 = por %p330, %p331
    %p334 = scmp.ne.s32.totalorder %s317, %s333
    %p335 = scmp.eq.s32.totalorder %s26, 0
    %p336 = por %p334, %p335
    %p337 = scmp.le.s32.totalorder 1, %s20
    %p338 = scmp.lt.s32.totalorder %s20, 3
    %p339 = pnand %p337, %p338
    %p340 = pneg %p339
    // Predicated region
    $region9: #{forward.1} parent=5 // pred_check
      _
    $region10: #{forward.1} parent=5 // pred_check_branch
      %342 = sbr.rel (%p339) target = $region12
    $region11: #{forward.1} parent=5 // pred_region
      %s343 = ssub.s32 %s20, 1
      // Predicated region
      $region13: #{forward.1} parent=11 // pred_check
        %p344 = pneg %p67
      $region14: #{forward.1} parent=11 // pred_check_branch
        %346 = sbr.rel (%p344) target = $region16
      $region15: #{forward.1} parent=11 // pred_region
        _
      $region16: #{forward.1} parent=11 // pred_fallthru
        _
      // Predicated region
      $region17: #{forward.1} parent=11 // pred_check
        %p347 = pneg %p88
      $region18: #{forward.1} parent=11 // pred_check_branch
        %349 = sbr.rel (%p347) target = $region20
      $region19: #{forward.1} parent=11 // pred_region
        _
      $region20: #{forward.1} parent=11 // pred_fallthru
        _
      // Predicated region
      $region21: #{forward.1} parent=11 // pred_check
        %p350 = pneg %p109
      $region22: #{forward.1} parent=11 // pred_check_branch
        %352 = sbr.rel (%p350) target = $region24
      $region23: #{forward.1} parent=11 // pred_region
        _
      $region24: #{forward.1} parent=11 // pred_fallthru
        _
      // Predicated region
      $region25: #{forward.1} parent=11 // pred_check
        %p353 = pneg %p130
      $region26: #{forward.1} parent=11 // pred_check_branch
        %355 = sbr.rel (%p353) target = $region28
      $region27: #{forward.1} parent=11 // pred_region
        _
      $region28: #{forward.1} parent=11 // pred_fallthru
        _
      // Predicated region
      $region29: #{forward.1} parent=11 // pred_check
        %p356 = pneg %p151
      $region30: #{forward.1} parent=11 // pred_check_branch
        %358 = sbr.rel (%p356) target = $region32
      $region31: #{forward.1} parent=11 // pred_region
        _
      $region32: #{forward.1} parent=11 // pred_fallthru
        _
      // Predicated region
      $region33: #{forward.1} parent=11 // pred_check
        %p359 = pneg %p172
      $region34: #{forward.1} parent=11 // pred_check_branch
        %361 = sbr.rel (%p359) target = $region36
      $region35: #{forward.1} parent=11 // pred_region
        _
      $region36: #{forward.1} parent=11 // pred_fallthru
        _
      // Predicated region
      $region37: #{forward.1} parent=11 // pred_check
        %p362 = pneg %p193
      $region38: #{forward.1} parent=11 // pred_check_branch
        %364 = sbr.rel (%p362) target = $region40
      $region39: #{forward.1} parent=11 // pred_region
        _
      $region40: #{forward.1} parent=11 // pred_fallthru
        _
      // Predicated region
      $region41: #{forward.1} parent=11 // pred_check
        %p365 = pneg %p214
      $region42: #{forward.1} parent=11 // pred_check_branch
        %367 = sbr.rel (%p365) target = $region44
      $region43: #{forward.1} parent=11 // pred_region
        _
      $region44: #{forward.1} parent=11 // pred_fallthru
        _
      // Predicated region
      $region45: #{forward.1} parent=11 // pred_check
        %p368 = pneg %p235
      $region46: #{forward.1} parent=11 // pred_check_branch
        %370 = sbr.rel (%p368) target = $region48
      $region47: #{forward.1} parent=11 // pred_region
        _
      $region48: #{forward.1} parent=11 // pred_fallthru
        _
      // Predicated region
      $region49: #{forward.1} parent=11 // pred_check
        %p371 = pneg %p256
      $region50: #{forward.1} parent=11 // pred_check_branch
        %373 = sbr.rel (%p371) target = $region52
      $region51: #{forward.1} parent=11 // pred_region
        _
      $region52: #{forward.1} parent=11 // pred_fallthru
        _
      // Predicated region
      $region53: #{forward.1} parent=11 // pred_check
        %p374 = pneg %p277
      $region54: #{forward.1} parent=11 // pred_check_branch
        %376 = sbr.rel (%p374) target = $region56
      $region55: #{forward.1} parent=11 // pred_region
        _
      $region56: #{forward.1} parent=11 // pred_fallthru
        _
    $region12: #{forward.1} parent=5 // pred_fallthru
      _
    %p377 = scmp.lt.s32.totalorder %s20, 2
    // Predicated region
    $region57: #{forward.1} parent=5 // pred_check
      %p378 = pneg %p377
    $region58: #{forward.1} parent=5 // pred_check_branch
      %380 = sbr.rel (%p378) target = $region60
    $region59: #{forward.1} parent=5 // pred_region
      // Predicated region
      $region61: #{forward.1} parent=59 // pred_check
        %p381 = pneg %p40
      $region62: #{forward.1} parent=59 // pred_check_branch
        %383 = sbr.rel (%p381) target = $region64
      $region63: #{forward.1} parent=59 // pred_region
        %p384 = scmp.lt.s32.totalorder %s20, 1
        %s385 = scalar_select %p384, %s20, 1
        %s386 = smul.addr %s385, 3
        %s387 = smul.addr %s386, 8
        %s388 = scalar_lea.vmem %s0, %s387
      $region64: #{forward.1} parent=59 // pred_fallthru
        _
    $region60: #{forward.1} parent=5 // pred_fallthru
      _
    %p389 = scmp.le.s32.totalorder 1, %s20
    %p390 = scmp.lt.s32.totalorder %s20, 3
    %p391 = pnand %p389, %p390
    %p392 = pneg %p391
    // Predicated region
    $region65: #{forward.1} parent=5 // pred_check
      _
    $region66: #{forward.1} parent=5 // pred_check_branch
      %394 = sbr.rel (%p391) target = $region68
    $region67: #{forward.1} parent=5 // pred_region
      %s395 = ssub.s32 %s20, 1
      %p396 = scmp.lt.s32.totalorder %s25, 1
      %s397 = scalar_select %p396, %s25, 1
      %s398 = smul.addr %s397, 3
      %s399 = smul.addr %s398, 8
      %s400 = scalar_lea.vmem %s0, %s399
      %p401 = pneg %p46
      %p402 = pneg %p43
      %p403 = pneg %p67
      %p404 = pneg %p64
      %p405 = pneg %p88
      %p406 = pneg %p85
      %p407 = pneg %p109
      %p408 = pneg %p106
      %p409 = pneg %p130
      %p410 = pneg %p127
      %p411 = pneg %p151
      %p412 = pneg %p148
      %p413 = pneg %p172
      %p414 = pneg %p169
      %p415 = pneg %p193
      %p416 = pneg %p190
      %p417 = pneg %p214
      %p418 = pneg %p211
      %p419 = pneg %p235
      %p420 = pneg %p232
      %p421 = pneg %p256
      %p422 = pneg %p253
      %p423 = pneg %p277
      %p424 = pneg %p274
      %p425 = pneg %p303
      %p426 = pneg %p300
      %p427 = scmp.lt.s32.totalorder %s25, 1
      %s428 = scalar_select %p427, %s25, 1
      %s429 = smul.addr %s428, 4
      %s430 = smul.addr %s429, 8
      %s431 = scalar_lea.vmem %s12, %s430
      %p432 = pneg %p329
      %p433 = pneg %p326
      %p434 = scmp.lt.s32.totalorder %s25, 1
      %s435 = scalar_select %p434, %s25, 1
      %s436 = scalar_lea.vmem %s13, %s435
      %p437 = scmp.lt.s32.totalorder %s25, 1
      %s438 = scalar_select %p437, %s25, 1
      %s439 = smul.addr %s438, 3
      %s440 = smul.addr %s439, 8
      %s441 = scalar_lea.vmem %s0, %s440
      %p442 = scmp.lt.s32.totalorder %s25, 1
      %s443 = scalar_select %p442, %s25, 1
      %s444 = smul.addr %s443, 4
      %s445 = smul.addr %s444, 8
      %s446 = scalar_lea.vmem %s12, %s445
      %p447 = scmp.lt.s32.totalorder %s25, 1
      %s448 = scalar_select %p447, %s25, 1
      %s449 = scalar_lea.vmem %s13, %s448
      %v451 = vld [vmem:[%s441] sm:$0xff]
      %v452 = vld [vmem:[%s441 + $0x8] sm:$0xff]
      %v453 = vld [vmem:[%s441 + $0x10] sm:$0x3]
      %v454 = vpack.c.bf16 %v452, %v451
      %v455 = vld [vmem:[%s1] sm:$0xff]
      %v456 = vld [vmem:[%s1 + $0x8] sm:$0xf]
      %v457 = vld [vmem:[%s1 + $0xc] sm:$0xff]
      %v458 = vld [vmem:[%s1 + $0x14] sm:$0xf]
      %v459 = vld [vmem:[%s1 + $0x18] sm:$0xff]
      %v460 = vld [vmem:[%s1 + $0x20] sm:$0xf]
      %v461 = vld [vmem:[%s1 + $0x24] sm:$0xff]
      %v462 = vld [vmem:[%s1 + $0x2c] sm:$0xf]
      %v463 = vld [vmem:[%s1 + $0x30] sm:$0xff]
      %v464 = vld [vmem:[%s1 + $0x38] sm:$0xf]
      %v465 = vld [vmem:[%s1 + $0x3c] sm:$0xff]
      %v466 = vld [vmem:[%s1 + $0x44] sm:$0xf]
      %v467 = vld [vmem:[%s1 + $0x48] sm:$0x77]
      %v468 = vld [vmem:[%s1 + $0x50] sm:$0x7]
      %v469 = vpack.c.bf16 %v453, %v453
      %s470 = scalar_lea.vmem %s1, 84
      %v471 = vld [vmem:[%s470] sm:$0xff]
      %v472 = vld [vmem:[%s470 + $0x8] sm:$0xf]
      %v473 = vld [vmem:[%s470 + $0xc] sm:$0xff]
      %v474 = vld [vmem:[%s470 + $0x14] sm:$0xf]
      %v475 = vld [vmem:[%s470 + $0x18] sm:$0xff]
      %v476 = vld [vmem:[%s470 + $0x20] sm:$0xf]
      %v477 = vld [vmem:[%s470 + $0x24] sm:$0xff]
      %v478 = vld [vmem:[%s470 + $0x2c] sm:$0xf]
      %v479 = vld [vmem:[%s470 + $0x30] sm:$0xff]
      %v480 = vld [vmem:[%s470 + $0x38] sm:$0xf]
      %v481 = vld [vmem:[%s470 + $0x3c] sm:$0xff]
      %v482 = vld [vmem:[%s470 + $0x44] sm:$0xf]
      %v483 = vld [vmem:[%s470 + $0x48] sm:$0x77]
      %v484 = vld [vmem:[%s470 + $0x50] sm:$0x7]
      %vm485 = vsmask.f32 7424
      %v487 = vshrl.u32 %v454, 16
      %v489 = vshll.u32 %v454, 16
      %v491 = vrot.slane %v489, 1
      %v492 = vor.u32 %v487, %v491
      %v494 = vshll.u32 %v469, 16
      %v496 = vrot.slane %v494, 1
      %v497 = vsel %vm485, %v492, %v496
      %v512 = vunpack.c.l.b16 %v471
      %v513 = vunpack.c.h.b16 %v471
      %v514 = vunpack.c.l.b16 %v472
      %v515 = vunpack.c.l.b16 %v473
      %v516 = vunpack.c.h.b16 %v473
      %v517 = vunpack.c.l.b16 %v474
      %v518 = vunpack.c.l.b16 %v475
      %v519 = vunpack.c.h.b16 %v475
      %v520 = vunpack.c.l.b16 %v476
      %v521 = vunpack.c.l.b16 %v477
      %v522 = vunpack.c.h.b16 %v477
      %v523 = vunpack.c.l.b16 %v478
      %v524 = vunpack.c.l.b16 %v479
      %v525 = vunpack.c.h.b16 %v479
      %v526 = vunpack.c.l.b16 %v480
      %v527 = vunpack.c.l.b16 %v481
      %v528 = vunpack.c.h.b16 %v481
      %v529 = vunpack.c.l.b16 %v482
      %v530 = vunpack.c.l.b16 %v483
      %v531 = vunpack.c.h.b16 %v483
      %v532 = vunpack.c.l.b16 %v484
      %v533 = vpack.c.b16 %v515, %v512
      %v534 = vpack.c.b16 %v516, %v513
      %v535 = vpack.c.b16 %v517, %v514
      %v536 = vpack.c.b16 %v521, %v518
      %v537 = vpack.c.b16 %v522, %v519
      %v538 = vpack.c.b16 %v523, %v520
      %v539 = vpack.c.b16 %v527, %v524
      %v540 = vpack.c.b16 %v528, %v525
      %v541 = vpack.c.b16 %v529, %v526
      %v542 = vpack.c.b16 %v530, %v530
      %v543 = vpack.c.b16 %v531, %v531
      %v544 = vpack.c.b16 %v532, %v532
      %vm554 = vcmask 441344
      %v556 = vsel %vm554, %v497, 0
      %vm558 = vcmask 1042432
      %v560 = vsel %vm558, %v542, 0
      %v563 = vsel %vm558, %v543, 0
      %v566 = vsel %vm558, %v544, 0
      %568 = vmatprep.subr.bf16.mxu0 %v534
      %569 = vmatpush1.bf16.msra.mxu0 %v533
      %570 = vmatprep.subr.bf16.mxu0 %v537
      %571 = vmatpush1.bf16.msra.mxu0 %v536
      %572 = vmatprep.subr.bf16.mxu0 %v540
      %573 = vmatpush1.bf16.msra.mxu0 %v539
      %574 = vmatprep.subr.bf16.mxu0 %v563
      %575 = vmatpush1.bf16.msra.mxu0 %v560
      %576 = vmatprep.subr.bf16.mxu0 0
      %577 = vmatpush1.bf16.msra.mxu0 0
      %578 = vmatprep.subr.bf16.mxu0 0
      %579 = vmatpush1.bf16.msra.mxu0 0
      %580 = vmatprep.subr.bf16.mxu0 0
      %581 = vmatpush1.bf16.msra.mxu0 0
      %582 = vmatprep.subr.bf16.mxu0 0
      %583 = vmatpush1.bf16.msra.mxu0 0
      %584 = vmatprep.subr.bf16.mxu0 0
      %585 = vmatpush1.bf16.msra.mxu0 0
      %586 = vmatprep.subr.bf16.mxu0 0
      %587 = vmatpush1.bf16.msra.mxu0 0
      %588 = vmatprep.subr.bf16.mxu0 0
      %589 = vmatpush1.bf16.msra.mxu0 0
      %590 = vmatprep.subr.bf16.mxu0 0
      %591 = vmatpush1.bf16.msra.mxu0 0
      %592 = vmatprep.subr.bf16.mxu0 0
      %593 = vmatpush1.bf16.msra.mxu0 0
      %594 = vmatprep.subr.bf16.mxu0 0
      %595 = vmatpush1.bf16.msra.mxu0 0
      %596 = vmatprep.subr.bf16.mxu0 0
      %597 = vmatpush1.bf16.msra.mxu0 0
      %598 = vmatprep.subr.bf16.mxu0 0
      %599 = vmatpush1.bf16.msra.mxu0 0
      %600 = vmatprep.mubr.bf16.mxu0 0
      %601 = vmatmul.mubr.bf16.gmra.mrb[0].mxu0 %v556
      %v602 = vpop.f32.mrb[0].mxu0
      %v603 = vadd.f32 0.0, %v602
      %v604 = vpop.f32.mrb[0].mxu0
      %v605 = vadd.f32 0.0, %v604
      %v606 = vpop.f32.mrb[0].mxu0
      %v607 = vadd.f32 0.0, %v606
      %v608 = vpop.f32.mrb[0].mxu0
      %v609 = vadd.f32 0.0, %v608
      %610 = vdwg.mxu0
      %611 = vmatprep.subr.bf16.mxu0 0
      %612 = vmatpush1.bf16.msra.mxu0 %v535
      %613 = vmatprep.subr.bf16.mxu0 0
      %614 = vmatpush1.bf16.msra.mxu0 %v538
      %615 = vmatprep.subr.bf16.mxu0 0
      %616 = vmatpush1.bf16.msra.mxu0 %v541
      %617 = vmatprep.subr.bf16.mxu0 0
      %618 = vmatpush1.bf16.msra.mxu0 %v566
      %619 = vmatprep.subr.bf16.mxu0 0
      %620 = vmatpush1.bf16.msra.mxu0 0
      %621 = vmatprep.subr.bf16.mxu0 0
      %622 = vmatpush1.bf16.msra.mxu0 0
      %623 = vmatprep.subr.bf16.mxu0 0
      %624 = vmatpush1.bf16.msra.mxu0 0
      %625 = vmatprep.subr.bf16.mxu0 0
      %626 = vmatpush1.bf16.msra.mxu0 0
      %627 = vmatprep.subr.bf16.mxu0 0
      %628 = vmatpush1.bf16.msra.mxu0 0
      %629 = vmatprep.subr.bf16.mxu0 0
      %630 = vmatpush1.bf16.msra.mxu0 0
      %631 = vmatprep.subr.bf16.mxu0 0
      %632 = vmatpush1.bf16.msra.mxu0 0
      %633 = vmatprep.subr.bf16.mxu0 0
      %634 = vmatpush1.bf16.msra.mxu0 0
      %635 = vmatprep.subr.bf16.mxu0 0
      %636 = vmatpush1.bf16.msra.mxu0 0
      %637 = vmatprep.subr.bf16.mxu0 0
      %638 = vmatpush1.bf16.msra.mxu0 0
      %639 = vmatprep.subr.bf16.mxu0 0
      %640 = vmatpush1.bf16.msra.mxu0 0
      %641 = vmatprep.subr.bf16.mxu0 0
      %642 = vmatpush1.bf16.msra.mxu0 0
      %643 = vmatprep.mubr.bf16.mxu0 0
      %644 = vmatmul.mubr.bf16.gmra.mrb[0].mxu0 %v556
      %v645 = vpop.f32.mrb[0].mxu0
      %v646 = vadd.f32 0.0, %v645
      %v647 = vpop.f32.mrb[0].mxu0
      %v648 = vpop.f32.mrb[0].mxu0
      %v649 = vadd.f32 0.0, %v648
      %v650 = vpop.f32.mrb[0].mxu0
      %651 = vdwg.mxu0
      %v666 = vunpack.c.l.b16 %v455
      %v667 = vunpack.c.h.b16 %v455
      %v668 = vunpack.c.l.b16 %v456
      %v669 = vunpack.c.l.b16 %v457
      %v670 = vunpack.c.h.b16 %v457
      %v671 = vunpack.c.l.b16 %v458
      %v672 = vunpack.c.l.b16 %v459
      %v673 = vunpack.c.h.b16 %v459
      %v674 = vunpack.c.l.b16 %v460
      %v675 = vunpack.c.l.b16 %v461
      %v676 = vunpack.c.h.b16 %v461
      %v677 = vunpack.c.l.b16 %v462
      %v678 = vunpack.c.l.b16 %v463
      %v679 = vunpack.c.h.b16 %v463
      %v680 = vunpack.c.l.b16 %v464
      %v681 = vunpack.c.l.b16 %v465
      %v682 = vunpack.c.h.b16 %v465
      %v683 = vunpack.c.l.b16 %v466
      %v684 = vunpack.c.l.b16 %v467
      %v685 = vunpack.c.h.b16 %v467
      %v686 = vunpack.c.l.b16 %v468
      %v687 = vpack.c.b16 %v669, %v666
      %v688 = vpack.c.b16 %v670, %v667
      %v689 = vpack.c.b16 %v671, %v668
      %v690 = vpack.c.b16 %v675, %v672
      %v691 = vpack.c.b16 %v676, %v673
      %v692 = vpack.c.b16 %v677, %v674
      %v693 = vpack.c.b16 %v681, %v678
      %v694 = vpack.c.b16 %v682, %v679
      %v695 = vpack.c.b16 %v683, %v680
      %v696 = vpack.c.b16 %v684, %v684
      %v697 = vpack.c.b16 %v685, %v685
      %v698 = vpack.c.b16 %v686, %v686
      %v708 = vsel %vm554, %v454, 0
      %v711 = vsel %vm558, %v696, 0
      %v714 = vsel %vm558, %v697, 0
      %v717 = vsel %vm558, %v698, 0
      %719 = vmatprep.subr.bf16.mxu0 %v688
      %720 = vmatpush1.bf16.msra.mxu0 %v687
      %721 = vmatprep.subr.bf16.mxu0 %v691
      %722 = vmatpush1.bf16.msra.mxu0 %v690
      %723 = vmatprep.subr.bf16.mxu0 %v694
      %724 = vmatpush1.bf16.msra.mxu0 %v693
      %725 = vmatprep.subr.bf16.mxu0 %v714
      %726 = vmatpush1.bf16.msra.mxu0 %v711
      %727 = vmatprep.subr.bf16.mxu0 0
      %728 = vmatpush1.bf16.msra.mxu0 0
      %729 = vmatprep.subr.bf16.mxu0 0
      %730 = vmatpush1.bf16.msra.mxu0 0
      %731 = vmatprep.subr.bf16.mxu0 0
      %732 = vmatpush1.bf16.msra.mxu0 0
      %733 = vmatprep.subr.bf16.mxu0 0
      %734 = vmatpush1.bf16.msra.mxu0 0
      %735 = vmatprep.subr.bf16.mxu0 0
      %736 = vmatpush1.bf16.msra.mxu0 0
      %737 = vmatprep.subr.bf16.mxu0 0
      %738 = vmatpush1.bf16.msra.mxu0 0
      %739 = vmatprep.subr.bf16.mxu0 0
      %740 = vmatpush1.bf16.msra.mxu0 0
      %741 = vmatprep.subr.bf16.mxu0 0
      %742 = vmatpush1.bf16.msra.mxu0 0
      %743 = vmatprep.subr.bf16.mxu0 0
      %744 = vmatpush1.bf16.msra.mxu0 0
      %745 = vmatprep.subr.bf16.mxu0 0
      %746 = vmatpush1.bf16.msra.mxu0 0
      %747 = vmatprep.subr.bf16.mxu0 0
      %748 = vmatpush1.bf16.msra.mxu0 0
      %749 = vmatprep.subr.bf16.mxu0 0
      %750 = vmatpush1.bf16.msra.mxu0 0
      %751 = vmatprep.mubr.bf16.mxu0 0
      %752 = vmatmul.mubr.bf16.gmra.mrb[0].mxu0 %v708
      %v753 = vpop.f32.mrb[0].mxu0
      %v754 = vadd.f32 %v603, %v753
      %v755 = vpop.f32.mrb[0].mxu0
      %v756 = vadd.f32 %v605, %v755
      %v757 = vpop.f32.mrb[0].mxu0
      %v758 = vadd.f32 %v607, %v757
      %v759 = vpop.f32.mrb[0].mxu0
      %v760 = vadd.f32 %v609, %v759
      %761 = vdwg.mxu0
      %762 = vmatprep.subr.bf16.mxu0 0
      %763 = vmatpush1.bf16.msra.mxu0 %v689
      %764 = vmatprep.subr.bf16.mxu0 0
      %765 = vmatpush1.bf16.msra.mxu0 %v692
      %766 = vmatprep.subr.bf16.mxu0 0
      %767 = vmatpush1.bf16.msra.mxu0 %v695
      %768 = vmatprep.subr.bf16.mxu0 0
      %769 = vmatpush1.bf16.msra.mxu0 %v717
      %770 = vmatprep.subr.bf16.mxu0 0
      %771 = vmatpush1.bf16.msra.mxu0 0
      %772 = vmatprep.subr.bf16.mxu0 0
      %773 = vmatpush1.bf16.msra.mxu0 0
      %774 = vmatprep.subr.bf16.mxu0 0
      %775 = vmatpush1.bf16.msra.mxu0 0
      %776 = vmatprep.subr.bf16.mxu0 0
      %777 = vmatpush1.bf16.msra.mxu0 0
      %778 = vmatprep.subr.bf16.mxu0 0
      %779 = vmatpush1.bf16.msra.mxu0 0
      %780 = vmatprep.subr.bf16.mxu0 0
      %781 = vmatpush1.bf16.msra.mxu0 0
      %782 = vmatprep.subr.bf16.mxu0 0
      %783 = vmatpush1.bf16.msra.mxu0 0
      %784 = vmatprep.subr.bf16.mxu0 0
      %785 = vmatpush1.bf16.msra.mxu0 0
      %786 = vmatprep.subr.bf16.mxu0 0
      %787 = vmatpush1.bf16.msra.mxu0 0
      %788 = vmatprep.subr.bf16.mxu0 0
      %789 = vmatpush1.bf16.msra.mxu0 0
      %790 = vmatprep.subr.bf16.mxu0 0
      %791 = vmatpush1.bf16.msra.mxu0 0
      %792 = vmatprep.subr.bf16.mxu0 0
      %793 = vmatpush1.bf16.msra.mxu0 0
      %794 = vmatprep.mubr.bf16.mxu0 0
      %795 = vmatmul.mubr.bf16.gmra.mrb[0].mxu0 %v708
      %v796 = vpop.f32.mrb[0].mxu0
      %v797 = vadd.f32 %v646, %v796
      %v798 = vpop.f32.mrb[0].mxu0
      %v799 = vpop.f32.mrb[0].mxu0
      %v800 = vadd.f32 %v649, %v799
      %v801 = vpop.f32.mrb[0].mxu0
      %802 = vdwg.mxu0
      %s803 = scalar_lea.vmem %s1, 168
      %v804 = vld [vmem:[%s803] sm:$0xff]
      %v805 = vld [vmem:[%s803 + $0x8] sm:$0xf]
      %v806 = vld [vmem:[%s803 + $0xc] sm:$0xff]
      %v807 = vld [vmem:[%s803 + $0x14] sm:$0xf]
      %v808 = vld [vmem:[%s803 + $0x18] sm:$0xff]
      %v809 = vld [vmem:[%s803 + $0x20] sm:$0xf]
      %v810 = vld [vmem:[%s803 + $0x24] sm:$0xff]
      %v811 = vld [vmem:[%s803 + $0x2c] sm:$0xf]
      %v812 = vld [vmem:[%s803 + $0x30] sm:$0xff]
      %v813 = vld [vmem:[%s803 + $0x38] sm:$0xf]
      %v814 = vld [vmem:[%s803 + $0x3c] sm:$0xff]
      %v815 = vld [vmem:[%s803 + $0x44] sm:$0xf]
      %v816 = vld [vmem:[%s803 + $0x48] sm:$0x77]
      %v817 = vld [vmem:[%s803 + $0x50] sm:$0x7]
      %vm820 = vcmask 1046528
      %v821 = vrot.slane %v454, 1
      %v822 = vrot.slane %v469, 1
      %v823 = vsel %vm820, %v821, %v822
      %v838 = vunpack.c.l.b16 %v804
      %v839 = vunpack.c.h.b16 %v804
      %v840 = vunpack.c.l.b16 %v805
      %v841 = vunpack.c.l.b16 %v806
      %v842 = vunpack.c.h.b16 %v806
      %v843 = vunpack.c.l.b16 %v807
      %v844 = vunpack.c.l.b16 %v808
      %v845 = vunpack.c.h.b16 %v808
      %v846 = vunpack.c.l.b16 %v809
      %v847 = vunpack.c.l.b16 %v810
      %v848 = vunpack.c.h.b16 %v810
      %v849 = vunpack.c.l.b16 %v811
      %v850 = vunpack.c.l.b16 %v812
      %v851 = vunpack.c.h.b16 %v812
      %v852 = vunpack.c.l.b16 %v813
      %v853 = vunpack.c.l.b16 %v814
      %v854 = vunpack.c.h.b16 %v814
      %v855 = vunpack.c.l.b16 %v815
      %v856 = vunpack.c.l.b16 %v816
      %v857 = vunpack.c.h.b16 %v816
      %v858 = vunpack.c.l.b16 %v817
      %v859 = vpack.c.b16 %v841, %v838
      %v860 = vpack.c.b16 %v842, %v839
      %v861 = vpack.c.b16 %v843, %v840
      %v862 = vpack.c.b16 %v847, %v844
      %v863 = vpack.c.b16 %v848, %v845
      %v864 = vpack.c.b16 %v849, %v846
      %v865 = vpack.c.b16 %v853, %v850
      %v866 = vpack.c.b16 %v854, %v851
      %v867 = vpack.c.b16 %v855, %v852
      %v868 = vpack.c.b16 %v856, %v856
      %v869 = vpack.c.b16 %v857, %v857
      %v870 = vpack.c.b16 %v858, %v858
      %v881 = vsel %vm554, %v823, 0
      %v884 = vsel %vm558, %v868, 0
      %v887 = vsel %vm558, %v869, 0
      %v890 = vsel %vm558, %v870, 0
      %892 = vmatprep.subr.bf16.mxu0 %v860
      %893 = vmatpush1.bf16.msra.mxu0 %v859
      %894 = vmatprep.subr.bf16.mxu0 %v863
      %895 = vmatpush1.bf16.msra.mxu0 %v862
      %896 = vmatprep.subr.bf16.mxu0 %v866
      %897 = vmatpush1.bf16.msra.mxu0 %v865
      %898 = vmatprep.subr.bf16.mxu0 %v887
      %899 = vmatpush1.bf16.msra.mxu0 %v884
      %900 = vmatprep.subr.bf16.mxu0 0
      %901 = vmatpush1.bf16.msra.mxu0 0
      %902 = vmatprep.subr.bf16.mxu0 0
      %903 = vmatpush1.bf16.msra.mxu0 0
      %904 = vmatprep.subr.bf16.mxu0 0
      %905 = vmatpush1.bf16.msra.mxu0 0
      %906 = vmatprep.subr.bf16.mxu0 0
      %907 = vmatpush1.bf16.msra.mxu0 0
      %908 = vmatprep.subr.bf16.mxu0 0
      %909 = vmatpush1.bf16.msra.mxu0 0
      %910 = vmatprep.subr.bf16.mxu0 0
      %911 = vmatpush1.bf16.msra.mxu0 0
      %912 = vmatprep.subr.bf16.mxu0 0
      %913 = vmatpush1.bf16.msra.mxu0 0
      %914 = vmatprep.subr.bf16.mxu0 0
      %915 = vmatpush1.bf16.msra.mxu0 0
      %916 = vmatprep.subr.bf16.mxu0 0
      %917 = vmatpush1.bf16.msra.mxu0 0
      %918 = vmatprep.subr.bf16.mxu0 0
      %919 = vmatpush1.bf16.msra.mxu0 0
      %920 = vmatprep.subr.bf16.mxu0 0
      %921 = vmatpush1.bf16.msra.mxu0 0
      %922 = vmatprep.subr.bf16.mxu0 0
      %923 = vmatpush1.bf16.msra.mxu0 0
      %924 = vmatprep.mubr.bf16.mxu0 0
      %925 = vmatmul.mubr.bf16.gmra.mrb[0].mxu0 %v881
      %v926 = vpop.f32.mrb[0].mxu0
      %v927 = vadd.f32 0.0, %v926
      %v928 = vpop.f32.mrb[0].mxu0
      %v929 = vadd.f32 0.0, %v928
      %v930 = vpop.f32.mrb[0].mxu0
      %v931 = vadd.f32 0.0, %v930
      %v932 = vpop.f32.mrb[0].mxu0
      %v933 = vadd.f32 0.0, %v932
      %934 = vdwg.mxu0
      %935 = vmatprep.subr.bf16.mxu0 0
      %936 = vmatpush1.bf16.msra.mxu0 %v861
      %937 = vmatprep.subr.bf16.mxu0 0
      %938 = vmatpush1.bf16.msra.mxu0 %v864
      %939 = vmatprep.subr.bf16.mxu0 0
      %940 = vmatpush1.bf16.msra.mxu0 %v867
      %941 = vmatprep.subr.bf16.mxu0 0
      %942 = vmatpush1.bf16.msra.mxu0 %v890
      %943 = vmatprep.subr.bf16.mxu0 0
      %944 = vmatpush1.bf16.msra.mxu0 0
      %945 = vmatprep.subr.bf16.mxu0 0
      %946 = vmatpush1.bf16.msra.mxu0 0
      %947 = vmatprep.subr.bf16.mxu0 0
      %948 = vmatpush1.bf16.msra.mxu0 0
      %949 = vmatprep.subr.bf16.mxu0 0
      %950 = vmatpush1.bf16.msra.mxu0 0
      %951 = vmatprep.subr.bf16.mxu0 0
      %952 = vmatpush1.bf16.msra.mxu0 0
      %953 = vmatprep.subr.bf16.mxu0 0
      %954 = vmatpush1.bf16.msra.mxu0 0
      %955 = vmatprep.subr.bf16.mxu0 0
      %956 = vmatpush1.bf16.msra.mxu0 0
      %957 = vmatprep.subr.bf16.mxu0 0
      %958 = vmatpush1.bf16.msra.mxu0 0
      %959 = vmatprep.subr.bf16.mxu0 0
      %960 = vmatpush1.bf16.msra.mxu0 0
      %961 = vmatprep.subr.bf16.mxu0 0
      %962 = vmatpush1.bf16.msra.mxu0 0
      %963 = vmatprep.subr.bf16.mxu0 0
      %964 = vmatpush1.bf16.msra.mxu0 0
      %965 = vmatprep.subr.bf16.mxu0 0
      %966 = vmatpush1.bf16.msra.mxu0 0
      %967 = vmatprep.mubr.bf16.mxu0 0
      %968 = vmatmul.mubr.bf16.gmra.mrb[0].mxu0 %v881
      %v969 = vpop.f32.mrb[0].mxu0
      %v970 = vadd.f32 0.0, %v969
      %v971 = vpop.f32.mrb[0].mxu0
      %v972 = vpop.f32.mrb[0].mxu0
      %v973 = vadd.f32 0.0, %v972
      %v974 = vpop.f32.mrb[0].mxu0
      %975 = vdwg.mxu0
      %v976 = vadd.f32 %v754, %v927
      %v977 = vadd.f32 %v756, %v929
      %v978 = vadd.f32 %v797, %v970
      %v979 = vadd.f32 %v758, %v931
      %v980 = vadd.f32 %v760, %v933
      %v981 = vadd.f32 %v800, %v973
      %v982 = vld [vmem:[%s2] sm:$0x7]
      %v984 = vlaneseq
      %v985 = vshrl.u32 %v984, 7
      %v986 = vsub.s32 0, %v985
      %v987 = vrot.slane %v982, %v986
      %v988 = vlaneseq
      %v989 = vshrl.u32 %v988, 7
      %v990 = vsub.s32 1, %v989
      %v991 = vrot.slane %v982, %v990
      %v992 = vlaneseq
      %v993 = vshrl.u32 %v992, 7
      %v994 = vsub.s32 2, %v993
      %v995 = vrot.slane %v982, %v994
      %v999 = vadd.f32 %v976, %v987
      %v1000 = vadd.f32 %v977, %v991
      %v1001 = vadd.f32 %v978, %v995
      %v1002 = vadd.f32 %v979, %v987
      %v1003 = vadd.f32 %v980, %v991
      %v1004 = vadd.f32 %v981, %v995
      %v1005 = vmax.f32 %v999, 0.0
      %v1006 = vmax.f32 %v1000, 0.0
      %v1007 = vmax.f32 %v1001, 0.0
      %v1008 = vmax.f32 %v1002, 0.0
      %v1009 = vmax.f32 %v1003, 0.0
      %v1010 = vmax.f32 %v1004, 0.0
      %v1011 = vpack.c.bf16 %v1008, %v1005
      %v1012 = vpack.c.bf16 %v1009, %v1006
      %v1013 = vpack.c.bf16 %v1010, %v1007
      %v1014 = vadd.f32 %v1005, %v1008
      %v1015 = vrot.slane %v1014, 4
      %v1016 = vadd.f32 %v1014, %v1015
      %v1017 = vrot.slane %v1016, 2
      %v1018 = vadd.f32 %v1016, %v1017
      %v1019 = vrot.slane %v1018, 1
      %v1020 = vadd.f32 %v1018, %v1019
      %v1021 = vadd.f32 %v1006, %v1009
      %v1022 = vrot.slane %v1021, 4
      %v1023 = vadd.f32 %v1021, %v1022
      %v1024 = vrot.slane %v1023, 2
      %v1025 = vadd.f32 %v1023, %v1024
      %v1026 = vrot.slane %v1025, 1
      %v1027 = vadd.f32 %v1025, %v1026
      %vm1028 = vcmask 261120
      %v1029 = vsel %vm1028, %v1007, 0.0
      %v1030 = vsel %vm1028, %v1010, 0.0
      %v1031 = vadd.f32 %v1029, %v1030
      %v1032 = vrot.slane %v1031, 4
      %v1033 = vadd.f32 %v1031, %v1032
      %v1034 = vrot.slane %v1033, 2
      %v1035 = vadd.f32 %v1033, %v1034
      %v1036 = vrot.slane %v1035, 1
      %v1037 = vadd.f32 %v1035, %v1036
      %v1038 = vpack.c.bf16 %v1020, %v1020
      %v1039 = vpack.c.bf16 %v1027, %v1027
      %v1040 = vpack.c.bf16 %v1037, %v1037
      %v1041 = vld [vmem:[%s8] sm:$0xf]
      %v1042 = vld [vmem:[%s8 + $0x4] sm:$0xf]
      %v1043 = vld [vmem:[%s8 + $0x8] sm:$0xf]
      %v1044 = vld [vmem:[%s8 + $0xc] sm:$0xf]
      %v1045 = vld [vmem:[%s8 + $0x10] sm:$0xf]
      %v1046 = vld [vmem:[%s8 + $0x14] sm:$0xf]
      %v1047 = vld [vmem:[%s8 + $0x18] sm:$0xf]
      %v1048 = vld [vmem:[%s8 + $0x1c] sm:$0xf]
      %v1049 = vld [vmem:[%s8 + $0x20] sm:$0xf]
      %v1050 = vld [vmem:[%s8 + $0x24] sm:$0xf]
      %v1051 = vld [vmem:[%s8 + $0x28] sm:$0xf]
      %v1052 = vld [vmem:[%s8 + $0x2c] sm:$0xf]
      %v1053 = vld [vmem:[%s8 + $0x30] sm:$0xf]
      %v1054 = vld [vmem:[%s8 + $0x34] sm:$0xf]
      %v1055 = vld [vmem:[%s8 + $0x38] sm:$0xf]
      %v1056 = vld [vmem:[%s8 + $0x3c] sm:$0xf]
      %v1057 = vld [vmem:[%s8 + $0x40] sm:$0xf]
      %v1058 = vld [vmem:[%s8 + $0x44] sm:$0xf]
      %v1059 = vld [vmem:[%s8 + $0x48] sm:$0xf]
      %v1060 = vld [vmem:[%s8 + $0x4c] sm:$0xf]
      %v1061 = vld [vmem:[%s8 + $0x50] sm:$0xf]
      %v1062 = vld [vmem:[%s8 + $0x54] sm:$0xf]
      %v1063 = vld [vmem:[%s8 + $0x58] sm:$0xf]
      %v1064 = vld [vmem:[%s8 + $0x5c] sm:$0xf]
      %v1065 = vld [vmem:[%s8 + $0x60] sm:$0xf]
      %v1066 = vld [vmem:[%s8 + $0x64] sm:$0xf]
      %v1067 = vld [vmem:[%s8 + $0x68] sm:$0xf]
      %v1068 = vld [vmem:[%s8 + $0x6c] sm:$0xf]
      %v1069 = vld [vmem:[%s8 + $0x70] sm:$0xf]
      %v1070 = vld [vmem:[%s8 + $0x74] sm:$0xf]
      %v1071 = vld [vmem:[%s8 + $0x78] sm:$0xf]
      %v1072 = vld [vmem:[%s8 + $0x7c] sm:$0xf]
      %v1073 = vld [vmem:[%s8 + $0x80] sm:$0xf]
      %v1074 = vld [vmem:[%s8 + $0x84] sm:$0xf]
      %v1075 = vld [vmem:[%s8 + $0x88] sm:$0xf]
      %v1076 = vld [vmem:[%s8 + $0x8c] sm:$0xf]
      %v1077 = vld [vmem:[%s9] sm:$0x1]
      %v1114 = vunpack.c.l.b16 %v1041
      %v1115 = vunpack.c.l.b16 %v1042
      %v1116 = vunpack.c.l.b16 %v1043
      %v1117 = vunpack.c.l.b16 %v1044
      %v1118 = vunpack.c.l.b16 %v1045
      %v1119 = vunpack.c.l.b16 %v1046
      %v1120 = vunpack.c.l.b16 %v1047
      %v1121 = vunpack.c.l.b16 %v1048
      %v1122 = vunpack.c.l.b16 %v1049
      %v1123 = vunpack.c.l.b16 %v1050
      %v1124 = vunpack.c.l.b16 %v1051
      %v1125 = vunpack.c.l.b16 %v1052
      %v1126 = vunpack.c.l.b16 %v1053
      %v1127 = vunpack.c.l.b16 %v1054
      %v1128 = vunpack.c.l.b16 %v1055
      %v1129 = vunpack.c.l.b16 %v1056
      %v1130 = vunpack.c.l.b16 %v1057
      %v1131 = vunpack.c.l.b16 %v1058
      %v1132 = vunpack.c.l.b16 %v1059
      %v1133 = vunpack.c.l.b16 %v1060
      %v1134 = vunpack.c.l.b16 %v1061
      %v1135 = vunpack.c.l.b16 %v1062
      %v1136 = vunpack.c.l.b16 %v1063
      %v1137 = vunpack.c.l.b16 %v1064
      %v1138 = vunpack.c.l.b16 %v1065
      %v1139 = vunpack.c.l.b16 %v1066
      %v1140 = vunpack.c.l.b16 %v1067
      %v1141 = vunpack.c.l.b16 %v1068
      %v1142 = vunpack.c.l.b16 %v1069
      %v1143 = vunpack.c.l.b16 %v1070
      %v1144 = vunpack.c.l.b16 %v1071
      %v1145 = vunpack.c.l.b16 %v1072
      %v1146 = vunpack.c.l.b16 %v1073
      %v1147 = vunpack.c.l.b16 %v1074
      %v1148 = vunpack.c.l.b16 %v1075
      %v1149 = vunpack.c.l.b16 %v1076
      %v1150 = vpack.c.b16 %v1115, %v1114
      %v1151 = vpack.c.b16 %v1117, %v1116
      %v1152 = vpack.c.b16 %v1119, %v1118
      %v1153 = vpack.c.b16 %v1121, %v1120
      %v1154 = vpack.c.b16 %v1123, %v1122
      %v1155 = vpack.c.b16 %v1125, %v1124
      %v1156 = vpack.c.b16 %v1127, %v1126
      %v1157 = vpack.c.b16 %v1129, %v1128
      %v1158 = vpack.c.b16 %v1131, %v1130
      %v1159 = vpack.c.b16 %v1133, %v1132
      %v1160 = vpack.c.b16 %v1135, %v1134
      %v1161 = vpack.c.b16 %v1137, %v1136
      %v1162 = vpack.c.b16 %v1139, %v1138
      %v1163 = vpack.c.b16 %v1141, %v1140
      %v1164 = vpack.c.b16 %v1143, %v1142
      %v1165 = vpack.c.b16 %v1145, %v1144
      %v1166 = vpack.c.b16 %v1147, %v1146
      %v1167 = vpack.c.b16 %v1149, %v1148
      %v1187 = vsel %vm1028, %v1040, 0
      %1189 = vmatprep.subr.bf16.mxu0 0
      %1190 = vmatpush1.bf16.msra.mxu0 %v1150
      %1191 = vmatprep.subr.bf16.mxu0 0
      %1192 = vmatpush1.bf16.msra.mxu0 %v1151
      %1193 = vmatprep.subr.bf16.mxu0 0
      %1194 = vmatpush1.bf16.msra.mxu0 %v1152
      %1195 = vmatprep.subr.bf16.mxu0 0
      %1196 = vmatpush1.bf16.msra.mxu0 %v1153
      %1197 = vmatprep.subr.bf16.mxu0 0
      %1198 = vmatpush1.bf16.msra.mxu0 %v1154
      %1199 = vmatprep.subr.bf16.mxu0 0
      %1200 = vmatpush1.bf16.msra.mxu0 %v1155
      %1201 = vmatprep.subr.bf16.mxu0 0
      %1202 = vmatpush1.bf16.msra.mxu0 %v1156
      %1203 = vmatprep.subr.bf16.mxu0 0
      %1204 = vmatpush1.bf16.msra.mxu0 %v1157
      %1205 = vmatprep.subr.bf16.mxu0 0
      %1206 = vmatpush1.bf16.msra.mxu0 %v1158
      %1207 = vmatprep.subr.bf16.mxu0 0
      %1208 = vmatpush1.bf16.msra.mxu0 %v1159
      %1209 = vmatprep.subr.bf16.mxu0 0
      %1210 = vmatpush1.bf16.msra.mxu0 %v1160
      %1211 = vmatprep.subr.bf16.mxu0 0
      %1212 = vmatpush1.bf16.msra.mxu0 %v1161
      %1213 = vmatprep.subr.bf16.mxu0 0
      %1214 = vmatpush1.bf16.msra.mxu0 %v1162
      %1215 = vmatprep.subr.bf16.mxu0 0
      %1216 = vmatpush1.bf16.msra.mxu0 %v1163
      %1217 = vmatprep.subr.bf16.mxu0 0
      %1218 = vmatpush1.bf16.msra.mxu0 %v1164
      %1219 = vmatprep.subr.bf16.mxu0 0
      %1220 = vmatpush1.bf16.msra.mxu0 %v1165
      %1221 = vmatprep.mubr.bf16.mxu0 %v1039
      %1222 = vmatmul.mubr.bf16.gmra.mrb[0].mxu0 %v1038
      %v1223 = vpop.f32.mrb[0].mxu0
      %v1224 = vadd.f32 %v1077, %v1223
      %v1225 = vpop.f32.mrb[0].mxu0
      %v1226 = vpop.f32.mrb[0].mxu0
      %v1227 = vpop.f32.mrb[0].mxu0
      %1228 = vdwg.mxu0
      %1229 = vmatprep.subr.bf16.mxu0 0
      %1230 = vmatpush1.bf16.msra.mxu0 %v1166
      %1231 = vmatprep.subr.bf16.mxu0 0
      %1232 = vmatpush1.bf16.msra.mxu0 %v1167
      %1233 = vmatprep.subr.bf16.mxu0 0
      %1234 = vmatpush1.bf16.msra.mxu0 0
      %1235 = vmatprep.subr.bf16.mxu0 0
      %1236 = vmatpush1.bf16.msra.mxu0 0
      %1237 = vmatprep.subr.bf16.mxu0 0
      %1238 = vmatpush1.bf16.msra.mxu0 0
      %1239 = vmatprep.subr.bf16.mxu0 0
      %1240 = vmatpush1.bf16.msra.mxu0 0
      %1241 = vmatprep.subr.bf16.mxu0 0
      %1242 = vmatpush1.bf16.msra.mxu0 0
      %1243 = vmatprep.subr.bf16.mxu0 0
      %1244 = vmatpush1.bf16.msra.mxu0 0
      %1245 = vmatprep.subr.bf16.mxu0 0
      %1246 = vmatpush1.bf16.msra.mxu0 0
      %1247 = vmatprep.subr.bf16.mxu0 0
      %1248 = vmatpush1.bf16.msra.mxu0 0
      %1249 = vmatprep.subr.bf16.mxu0 0
      %1250 = vmatpush1.bf16.msra.mxu0 0
      %1251 = vmatprep.subr.bf16.mxu0 0
      %1252 = vmatpush1.bf16.msra.mxu0 0
      %1253 = vmatprep.subr.bf16.mxu0 0
      %1254 = vmatpush1.bf16.msra.mxu0 0
      %1255 = vmatprep.subr.bf16.mxu0 0
      %1256 = vmatpush1.bf16.msra.mxu0 0
      %1257 = vmatprep.subr.bf16.mxu0 0
      %1258 = vmatpush1.bf16.msra.mxu0 0
      %1259 = vmatprep.subr.bf16.mxu0 0
      %1260 = vmatpush1.bf16.msra.mxu0 0
      %1261 = vmatprep.mubr.bf16.mxu0 0
      %1262 = vmatmul.mubr.bf16.gmra.mrb[0].mxu0 %v1187
      %v1263 = vpop.f32.mrb[0].mxu0
      %v1264 = vadd.f32 %v1224, %v1263
      %v1265 = vpop.f32.mrb[0].mxu0
      %v1266 = vpop.f32.mrb[0].mxu0
      %v1267 = vpop.f32.mrb[0].mxu0
      %1268 = vdwg.mxu0
      %v1269 = vmax.f32 %v1264, 0.0
      %v1270 = vpack.c.bf16 %v1269, %v1269
      %v1271 = vld [vmem:[%s10] sm:$0xf]
      %v1272 = vld [vmem:[%s10 + $0x4] sm:$0xf]
      %v1273 = vld [vmem:[%s10 + $0x8] sm:$0xf]
      %v1274 = vld [vmem:[%s10 + $0xc] sm:$0xf]
      %v1275 = vld [vmem:[%s11] sm:$0x1]
      %v1280 = vunpack.c.l.b16 %v1271
      %v1281 = vunpack.c.l.b16 %v1272
      %v1282 = vunpack.c.l.b16 %v1273
      %v1283 = vunpack.c.l.b16 %v1274
      %v1284 = vpack.c.b16 %v1281, %v1280
      %v1285 = vpack.c.b16 %v1283, %v1282
      %v1289 = vsel %vm1028, %v1270, 0
      %1291 = vmatprep.subr.bf16.mxu0 0
      %1292 = vmatpush1.bf16.msra.mxu0 %v1284
      %1293 = vmatprep.subr.bf16.mxu0 0
      %1294 = vmatpush1.bf16.msra.mxu0 %v1285
      %1295 = vmatprep.subr.bf16.mxu0 0
      %1296 = vmatpush1.bf16.msra.mxu0 0
      %1297 = vmatprep.subr.bf16.mxu0 0
      %1298 = vmatpush1.bf16.msra.mxu0 0
      %1299 = vmatprep.subr.bf16.mxu0 0
      %1300 = vmatpush1.bf16.msra.mxu0 0
      %1301 = vmatprep.subr.bf16.mxu0 0
      %1302 = vmatpush1.bf16.msra.mxu0 0
      %1303 = vmatprep.subr.bf16.mxu0 0
      %1304 = vmatpush1.bf16.msra.mxu0 0
      %1305 = vmatprep.subr.bf16.mxu0 0
      %1306 = vmatpush1.bf16.msra.mxu0 0
      %1307 = vmatprep.subr.bf16.mxu0 0
      %1308 = vmatpush1.bf16.msra.mxu0 0
      %1309 = vmatprep.subr.bf16.mxu0 0
      %1310 = vmatpush1.bf16.msra.mxu0 0
      %1311 = vmatprep.subr.bf16.mxu0 0
      %1312 = vmatpush1.bf16.msra.mxu0 0
      %1313 = vmatprep.subr.bf16.mxu0 0
      %1314 = vmatpush1.bf16.msra.mxu0 0
      %1315 = vmatprep.subr.bf16.mxu0 0
      %1316 = vmatpush1.bf16.msra.mxu0 0
      %1317 = vmatprep.subr.bf16.mxu0 0
      %1318 = vmatpush1.bf16.msra.mxu0 0
      %1319 = vmatprep.subr.bf16.mxu0 0
      %1320 = vmatpush1.bf16.msra.mxu0 0
      %1321 = vmatprep.subr.bf16.mxu0 0
      %1322 = vmatpush1.bf16.msra.mxu0 0
      %1323 = vmatprep.mubr.bf16.mxu0 0
      %1324 = vmatmul.mubr.bf16.gmra.mrb[0].mxu0 %v1289
      %v1325 = vpop.f32.mrb[0].mxu0
      %v1326 = vadd.f32 %v1275, %v1325
      %v1327 = vpop.f32.mrb[0].mxu0
      %v1328 = vpop.f32.mrb[0].mxu0
      %v1329 = vpop.f32.mrb[0].mxu0
      %1330 = vdwg.mxu0
      %1331 = vst [vmem:[%s449] sm:$0x1] %v1326
      %v1332 = vld [vmem:[%s3] sm:$0xf]
      %v1333 = vld [vmem:[%s3 + $0x4] sm:$0xf]
      %v1336 = vunpack.c.l.b16 %v1332
      %v1337 = vunpack.c.l.b16 %v1333
      %v1338 = vpack.c.b16 %v1337, %v1336
      %vm1339 = vcmask 130048
      %v1341 = vsel %vm1339, %v1338, 0
      %1343 = vmatprep.subr.bf16.mxu0 %v1012
      %1344 = vmatpush1.bf16.msra.mxu0 %v1011
      %1345 = vmatprep.subr.bf16.mxu0 0
      %1346 = vmatpush1.bf16.msra.mxu0 0
      %1347 = vmatprep.subr.bf16.mxu0 0
      %1348 = vmatpush1.bf16.msra.mxu0 0
      %1349 = vmatprep.subr.bf16.mxu0 0
      %1350 = vmatpush1.bf16.msra.mxu0 0
      %1351 = vmatprep.subr.bf16.mxu0 0
      %1352 = vmatpush1.bf16.msra.mxu0 0
      %1353 = vmatprep.subr.bf16.mxu0 0
      %1354 = vmatpush1.bf16.msra.mxu0 0
      %1355 = vmatprep.subr.bf16.mxu0 0
      %1356 = vmatpush1.bf16.msra.mxu0 0
      %1357 = vmatprep.subr.bf16.mxu0 0
      %1358 = vmatpush1.bf16.msra.mxu0 0
      %1359 = vmatprep.subr.bf16.mxu0 0
      %1360 = vmatpush1.bf16.msra.mxu0 0
      %1361 = vmatprep.subr.bf16.mxu0 0
      %1362 = vmatpush1.bf16.msra.mxu0 0
      %1363 = vmatprep.subr.bf16.mxu0 0
      %1364 = vmatpush1.bf16.msra.mxu0 0
      %1365 = vmatprep.subr.bf16.mxu0 0
      %1366 = vmatpush1.bf16.msra.mxu0 0
      %1367 = vmatprep.subr.bf16.mxu0 0
      %1368 = vmatpush1.bf16.msra.mxu0 0
      %1369 = vmatprep.subr.bf16.mxu0 0
      %1370 = vmatpush1.bf16.msra.mxu0 0
      %1371 = vmatprep.subr.bf16.mxu0 0
      %1372 = vmatpush1.bf16.msra.mxu0 0
      %1373 = vmatprep.subr.bf16.mxu0 0
      %1374 = vmatpush1.bf16.msra.mxu0 0
      %1375 = vmatprep.mubr.bf16.mxu0 0
      %1376 = vmatmul.mubr.bf16.gmra.mrb[0].mxu0 %v1341
      %v1377 = vpop.f32.mrb[0].mxu0
      %v1378 = vadd.f32 0.0, %v1377
      %v1379 = vpop.f32.mrb[0].mxu0
      %v1380 = vadd.f32 0.0, %v1379
      %v1381 = vpop.f32.mrb[0].mxu0
      %v1382 = vadd.f32 0.0, %v1381
      %v1383 = vpop.f32.mrb[0].mxu0
      %v1384 = vadd.f32 0.0, %v1383
      %1385 = vdwg.mxu0
      %1386 = vmatprep.subr.bf16.mxu0 0
      %1387 = vmatpush1.bf16.msra.mxu0 %v1013
      %1388 = vmatprep.subr.bf16.mxu0 0
      %1389 = vmatpush1.bf16.msra.mxu0 0
      %1390 = vmatprep.subr.bf16.mxu0 0
      %1391 = vmatpush1.bf16.msra.mxu0 0
      %1392 = vmatprep.subr.bf16.mxu0 0
      %1393 = vmatpush1.bf16.msra.mxu0 0
      %1394 = vmatprep.subr.bf16.mxu0 0
      %1395 = vmatpush1.bf16.msra.mxu0 0
      %1396 = vmatprep.subr.bf16.mxu0 0
      %1397 = vmatpush1.bf16.msra.mxu0 0
      %1398 = vmatprep.subr.bf16.mxu0 0
      %1399 = vmatpush1.bf16.msra.mxu0 0
      %1400 = vmatprep.subr.bf16.mxu0 0
      %1401 = vmatpush1.bf16.msra.mxu0 0
      %1402 = vmatprep.subr.bf16.mxu0 0
      %1403 = vmatpush1.bf16.msra.mxu0 0
      %1404 = vmatprep.subr.bf16.mxu0 0
      %1405 = vmatpush1.bf16.msra.mxu0 0
      %1406 = vmatprep.subr.bf16.mxu0 0
      %1407 = vmatpush1.bf16.msra.mxu0 0
      %1408 = vmatprep.subr.bf16.mxu0 0
      %1409 = vmatpush1.bf16.msra.mxu0 0
      %1410 = vmatprep.subr.bf16.mxu0 0
      %1411 = vmatpush1.bf16.msra.mxu0 0
      %1412 = vmatprep.subr.bf16.mxu0 0
      %1413 = vmatpush1.bf16.msra.mxu0 0
      %1414 = vmatprep.subr.bf16.mxu0 0
      %1415 = vmatpush1.bf16.msra.mxu0 0
      %1416 = vmatprep.subr.bf16.mxu0 0
      %1417 = vmatpush1.bf16.msra.mxu0 0
      %1418 = vmatprep.mubr.bf16.mxu0 0
      %1419 = vmatmul.mubr.bf16.gmra.mrb[0].mxu0 %v1341
      %v1420 = vpop.f32.mrb[0].mxu0
      %v1421 = vadd.f32 0.0, %v1420
      %v1422 = vpop.f32.mrb[0].mxu0
      %v1423 = vpop.f32.mrb[0].mxu0
      %v1424 = vadd.f32 0.0, %v1423
      %v1425 = vpop.f32.mrb[0].mxu0
      %1426 = vdwg.mxu0
      %v1427 = vpack.c.bf16 %v1382, %v1378
      %v1428 = vpack.c.bf16 %v1384, %v1380
      %v1429 = vpack.c.bf16 %v1424, %v1421
      %s1430 = scalar_lea.vmem %s3, 8
      %v1431 = vld [vmem:[%s1430] sm:$0xf]
      %v1432 = vld [vmem:[%s1430 + $0x4] sm:$0xf]
      %v1435 = vunpack.c.l.b16 %v1431
      %v1436 = vunpack.c.l.b16 %v1432
      %v1437 = vpack.c.b16 %v1436, %v1435
      %v1439 = vsel %vm1339, %v1437, 0
      %1441 = vmatprep.subr.bf16.mxu0 %v1012
      %1442 = vmatpush1.bf16.msra.mxu0 %v1011
      %1443 = vmatprep.subr.bf16.mxu0 0
      %1444 = vmatpush1.bf16.msra.mxu0 0
      %1445 = vmatprep.subr.bf16.mxu0 0
      %1446 = vmatpush1.bf16.msra.mxu0 0
      %1447 = vmatprep.subr.bf16.mxu0 0
      %1448 = vmatpush1.bf16.msra.mxu0 0
      %1449 = vmatprep.subr.bf16.mxu0 0
      %1450 = vmatpush1.bf16.msra.mxu0 0
      %1451 = vmatprep.subr.bf16.mxu0 0
      %1452 = vmatpush1.bf16.msra.mxu0 0
      %1453 = vmatprep.subr.bf16.mxu0 0
      %1454 = vmatpush1.bf16.msra.mxu0 0
      %1455 = vmatprep.subr.bf16.mxu0 0
      %1456 = vmatpush1.bf16.msra.mxu0 0
      %1457 = vmatprep.subr.bf16.mxu0 0
      %1458 = vmatpush1.bf16.msra.mxu0 0
      %1459 = vmatprep.subr.bf16.mxu0 0
      %1460 = vmatpush1.bf16.msra.mxu0 0
      %1461 = vmatprep.subr.bf16.mxu0 0
      %1462 = vmatpush1.bf16.msra.mxu0 0
      %1463 = vmatprep.subr.bf16.mxu0 0
      %1464 = vmatpush1.bf16.msra.mxu0 0
      %1465 = vmatprep.subr.bf16.mxu0 0
      %1466 = vmatpush1.bf16.msra.mxu0 0
      %1467 = vmatprep.subr.bf16.mxu0 0
      %1468 = vmatpush1.bf16.msra.mxu0 0
      %1469 = vmatprep.subr.bf16.mxu0 0
      %1470 = vmatpush1.bf16.msra.mxu0 0
      %1471 = vmatprep.subr.bf16.mxu0 0
      %1472 = vmatpush1.bf16.msra.mxu0 0
      %1473 = vmatprep.mubr.bf16.mxu0 0
      %1474 = vmatmul.mubr.bf16.gmra.mrb[0].mxu0 %v1439
      %v1475 = vpop.f32.mrb[0].mxu0
      %v1476 = vadd.f32 0.0, %v1475
      %v1477 = vpop.f32.mrb[0].mxu0
      %v1478 = vadd.f32 0.0, %v1477
      %v1479 = vpop.f32.mrb[0].mxu0
      %v1480 = vadd.f32 0.0, %v1479
      %v1481 = vpop.f32.mrb[0].mxu0
      %v1482 = vadd.f32 0.0, %v1481
      %1483 = vdwg.mxu0
      %1484 = vmatprep.subr.bf16.mxu0 0
      %1485 = vmatpush1.bf16.msra.mxu0 %v1013
      %1486 = vmatprep.subr.bf16.mxu0 0
      %1487 = vmatpush1.bf16.msra.mxu0 0
      %1488 = vmatprep.subr.bf16.mxu0 0
      %1489 = vmatpush1.bf16.msra.mxu0 0
      %1490 = vmatprep.subr.bf16.mxu0 0
      %1491 = vmatpush1.bf16.msra.mxu0 0
      %1492 = vmatprep.subr.bf16.mxu0 0
      %1493 = vmatpush1.bf16.msra.mxu0 0
      %1494 = vmatprep.subr.bf16.mxu0 0
      %1495 = vmatpush1.bf16.msra.mxu0 0
      %1496 = vmatprep.subr.bf16.mxu0 0
      %1497 = vmatpush1.bf16.msra.mxu0 0
      %1498 = vmatprep.subr.bf16.mxu0 0
      %1499 = vmatpush1.bf16.msra.mxu0 0
      %1500 = vmatprep.subr.bf16.mxu0 0
      %1501 = vmatpush1.bf16.msra.mxu0 0
      %1502 = vmatprep.subr.bf16.mxu0 0
      %1503 = vmatpush1.bf16.msra.mxu0 0
      %1504 = vmatprep.subr.bf16.mxu0 0
      %1505 = vmatpush1.bf16.msra.mxu0 0
      %1506 = vmatprep.subr.bf16.mxu0 0
      %1507 = vmatpush1.bf16.msra.mxu0 0
      %1508 = vmatprep.subr.bf16.mxu0 0
      %1509 = vmatpush1.bf16.msra.mxu0 0
      %1510 = vmatprep.subr.bf16.mxu0 0
      %1511 = vmatpush1.bf16.msra.mxu0 0
      %1512 = vmatprep.subr.bf16.mxu0 0
      %1513 = vmatpush1.bf16.msra.mxu0 0
      %1514 = vmatprep.subr.bf16.mxu0 0
      %1515 = vmatpush1.bf16.msra.mxu0 0
      %1516 = vmatprep.mubr.bf16.mxu0 0
      %1517 = vmatmul.mubr.bf16.gmra.mrb[0].mxu0 %v1439
      %v1518 = vpop.f32.mrb[0].mxu0
      %v1519 = vadd.f32 0.0, %v1518
      %v1520 = vpop.f32.mrb[0].mxu0
      %v1521 = vpop.f32.mrb[0].mxu0
      %v1522 = vadd.f32 0.0, %v1521
      %v1523 = vpop.f32.mrb[0].mxu0
      %1524 = vdwg.mxu0
      %v1525 = vpack.c.bf16 %v1480, %v1476
      %v1526 = vpack.c.bf16 %v1482, %v1478
      %v1527 = vpack.c.bf16 %v1522, %v1519
      %v1528 = vld [vmem:[%s4] sm:$0xff]
      %v1529 = vld [vmem:[%s4 + $0x8] sm:$0xff]
      %v1530 = vld [vmem:[%s4 + $0x10] sm:$0xff]
      %v1531 = vld [vmem:[%s4 + $0x18] sm:$0xff]
      %v1532 = vld [vmem:[%s4 + $0x20] sm:$0xff]
      %v1533 = vld [vmem:[%s4 + $0x28] sm:$0xff]
      %v1534 = vld [vmem:[%s4 + $0x30] sm:$0xff]
      %v1535 = vld [vmem:[%s4 + $0x38] sm:$0xff]
      %v1536 = vld [vmem:[%s4 + $0x40] sm:$0xff]
      %v1537 = vld [vmem:[%s4 + $0x48] sm:$0xff]
      %v1538 = vld [vmem:[%s4 + $0x50] sm:$0xff]
      %v1539 = vld [vmem:[%s4 + $0x58] sm:$0xff]
      %v1540 = vld [vmem:[%s4 + $0x60] sm:$0xff]
      %v1541 = vld [vmem:[%s4 + $0x68] sm:$0xff]
      %v1542 = vld [vmem:[%s4 + $0x70] sm:$0xff]
      %v1543 = vld [vmem:[%s4 + $0x78] sm:$0xff]
      %v1544 = vld [vmem:[%s4 + $0x80] sm:$0xff]
      %v1545 = vld [vmem:[%s4 + $0x88] sm:$0xff]
      %v1546 = vld [vmem:[%s4 + $0x90] sm:$0xff]
      %v1547 = vld [vmem:[%s4 + $0x98] sm:$0xff]
      %v1548 = vld [vmem:[%s4 + $0xa0] sm:$0xff]
      %v1549 = vld [vmem:[%s4 + $0xa8] sm:$0xff]
      %v1550 = vld [vmem:[%s4 + $0xb0] sm:$0xff]
      %v1551 = vld [vmem:[%s4 + $0xb8] sm:$0xff]
      %v1552 = vld [vmem:[%s4 + $0xc0] sm:$0xff]
      %v1553 = vld [vmem:[%s4 + $0xc8] sm:$0xff]
      %v1554 = vld [vmem:[%s4 + $0xd0] sm:$0xff]
      %v1555 = vld [vmem:[%s4 + $0xd8] sm:$0xff]
      %v1556 = vld [vmem:[%s4 + $0xe0] sm:$0xff]
      %v1557 = vld [vmem:[%s4 + $0xe8] sm:$0xff]
      %v1558 = vld [vmem:[%s4 + $0xf0] sm:$0xff]
      %v1559 = vld [vmem:[%s4 + $0xf8] sm:$0xff]
      %v1560 = vld [vmem:[%s4 + $0x100] sm:$0xff]
      %v1561 = vld [vmem:[%s4 + $0x108] sm:$0xff]
      %v1562 = vld [vmem:[%s4 + $0x110] sm:$0xff]
      %v1563 = vld [vmem:[%s4 + $0x118] sm:$0xff]
      %s1564 = scalar_lea.vmem %s4, 288
      %v1565 = vld [vmem:[%s1564] sm:$0xff]
      %v1566 = vld [vmem:[%s1564 + $0x8] sm:$0xff]
      %v1567 = vld [vmem:[%s1564 + $0x10] sm:$0xff]
      %v1568 = vld [vmem:[%s1564 + $0x18] sm:$0xff]
      %v1569 = vld [vmem:[%s1564 + $0x20] sm:$0xff]
      %v1570 = vld [vmem:[%s1564 + $0x28] sm:$0xff]
      %v1571 = vld [vmem:[%s1564 + $0x30] sm:$0xff]
      %v1572 = vld [vmem:[%s1564 + $0x38] sm:$0xff]
      %v1573 = vld [vmem:[%s1564 + $0x40] sm:$0xff]
      %v1574 = vld [vmem:[%s1564 + $0x48] sm:$0xff]
      %v1575 = vld [vmem:[%s1564 + $0x50] sm:$0xff]
      %v1576 = vld [vmem:[%s1564 + $0x58] sm:$0xff]
      %v1577 = vld [vmem:[%s1564 + $0x60] sm:$0xff]
      %v1578 = vld [vmem:[%s1564 + $0x68] sm:$0xff]
      %v1579 = vld [vmem:[%s1564 + $0x70] sm:$0xff]
      %v1580 = vld [vmem:[%s1564 + $0x78] sm:$0xff]
      %v1581 = vld [vmem:[%s1564 + $0x80] sm:$0xff]
      %v1582 = vld [vmem:[%s1564 + $0x88] sm:$0xff]
      %v1583 = vld [vmem:[%s1564 + $0x90] sm:$0xff]
      %v1584 = vld [vmem:[%s1564 + $0x98] sm:$0xff]
      %v1585 = vld [vmem:[%s1564 + $0xa0] sm:$0xff]
      %v1586 = vld [vmem:[%s1564 + $0xa8] sm:$0xff]
      %v1587 = vld [vmem:[%s1564 + $0xb0] sm:$0xff]
      %v1588 = vld [vmem:[%s1564 + $0xb8] sm:$0xff]
      %v1589 = vld [vmem:[%s1564 + $0xc0] sm:$0xff]
      %v1590 = vld [vmem:[%s1564 + $0xc8] sm:$0xff]
      %v1591 = vld [vmem:[%s1564 + $0xd0] sm:$0xff]
      %v1592 = vld [vmem:[%s1564 + $0xd8] sm:$0xff]
      %v1593 = vld [vmem:[%s1564 + $0xe0] sm:$0xff]
      %v1594 = vld [vmem:[%s1564 + $0xe8] sm:$0xff]
      %v1595 = vld [vmem:[%s1564 + $0xf0] sm:$0xff]
      %v1596 = vld [vmem:[%s1564 + $0xf8] sm:$0xff]
      %v1597 = vld [vmem:[%s1564 + $0x100] sm:$0xff]
      %v1598 = vld [vmem:[%s1564 + $0x108] sm:$0xff]
      %v1599 = vld [vmem:[%s1564 + $0x110] sm:$0xff]
      %v1600 = vld [vmem:[%s1564 + $0x118] sm:$0xff]
      %v1637 = vunpack.c.l.b16 %v1565
      %v1638 = vunpack.c.h.b16 %v1565
      %v1639 = vunpack.c.l.b16 %v1566
      %v1640 = vunpack.c.h.b16 %v1566
      %v1641 = vunpack.c.l.b16 %v1567
      %v1642 = vunpack.c.h.b16 %v1567
      %v1643 = vunpack.c.l.b16 %v1568
      %v1644 = vunpack.c.h.b16 %v1568
      %v1645 = vunpack.c.l.b16 %v1569
      %v1646 = vunpack.c.h.b16 %v1569
      %v1647 = vunpack.c.l.b16 %v1570
      %v1648 = vunpack.c.h.b16 %v1570
      %v1649 = vunpack.c.l.b16 %v1571
      %v1650 = vunpack.c.h.b16 %v1571
      %v1651 = vunpack.c.l.b16 %v1572
      %v1652 = vunpack.c.h.b16 %v1572
      %v1653 = vunpack.c.l.b16 %v1573
      %v1654 = vunpack.c.h.b16 %v1573
      %v1655 = vunpack.c.l.b16 %v1574
      %v1656 = vunpack.c.h.b16 %v1574
      %v1657 = vunpack.c.l.b16 %v1575
      %v1658 = vunpack.c.h.b16 %v1575
      %v1659 = vunpack.c.l.b16 %v1576
      %v1660 = vunpack.c.h.b16 %v1576
      %v1661 = vunpack.c.l.b16 %v1577
      %v1662 = vunpack.c.h.b16 %v1577
      %v1663 = vunpack.c.l.b16 %v1578
      %v1664 = vunpack.c.h.b16 %v1578
      %v1665 = vunpack.c.l.b16 %v1579
      %v1666 = vunpack.c.h.b16 %v1579
      %v1667 = vunpack.c.l.b16 %v1580
      %v1668 = vunpack.c.h.b16 %v1580
      %v1669 = vunpack.c.l.b16 %v1581
      %v1670 = vunpack.c.h.b16 %v1581
      %v1671 = vunpack.c.l.b16 %v1582
      %v1672 = vunpack.c.h.b16 %v1582
      %v1673 = vunpack.c.l.b16 %v1583
      %v1674 = vunpack.c.h.b16 %v1583
      %v1675 = vunpack.c.l.b16 %v1584
      %v1676 = vunpack.c.h.b16 %v1584
      %v1677 = vunpack.c.l.b16 %v1585
      %v1678 = vunpack.c.h.b16 %v1585
      %v1679 = vunpack.c.l.b16 %v1586
      %v1680 = vunpack.c.h.b16 %v1586
      %v1681 = vunpack.c.l.b16 %v1587
      %v1682 = vunpack.c.h.b16 %v1587
      %v1683 = vunpack.c.l.b16 %v1588
      %v1684 = vunpack.c.h.b16 %v1588
      %v1685 = vunpack.c.l.b16 %v1589
      %v1686 = vunpack.c.h.b16 %v1589
      %v1687 = vunpack.c.l.b16 %v1590
      %v1688 = vunpack.c.h.b16 %v1590
      %v1689 = vunpack.c.l.b16 %v1591
      %v1690 = vunpack.c.h.b16 %v1591
      %v1691 = vunpack.c.l.b16 %v1592
      %v1692 = vunpack.c.h.b16 %v1592
      %v1693 = vunpack.c.l.b16 %v1593
      %v1694 = vunpack.c.h.b16 %v1593
      %v1695 = vunpack.c.l.b16 %v1594
      %v1696 = vunpack.c.h.b16 %v1594
      %v1697 = vunpack.c.l.b16 %v1595
      %v1698 = vunpack.c.h.b16 %v1595
      %v1699 = vunpack.c.l.b16 %v1596
      %v1700 = vunpack.c.h.b16 %v1596
      %v1701 = vunpack.c.l.b16 %v1597
      %v1702 = vunpack.c.h.b16 %v1597
      %v1703 = vunpack.c.l.b16 %v1598
      %v1704 = vunpack.c.h.b16 %v1598
      %v1705 = vunpack.c.l.b16 %v1599
      %v1706 = vunpack.c.h.b16 %v1599
      %v1707 = vunpack.c.l.b16 %v1600
      %v1708 = vunpack.c.h.b16 %v1600
      %v1709 = vpack.c.b16 %v1639, %v1637
      %v1710 = vpack.c.b16 %v1640, %v1638
      %v1711 = vpack.c.b16 %v1643, %v1641
      %v1712 = vpack.c.b16 %v1644, %v1642
      %v1713 = vpack.c.b16 %v1647, %v1645
      %v1714 = vpack.c.b16 %v1648, %v1646
      %v1715 = vpack.c.b16 %v1651, %v1649
      %v1716 = vpack.c.b16 %v1652, %v1650
      %v1717 = vpack.c.b16 %v1655, %v1653
      %v1718 = vpack.c.b16 %v1656, %v1654
      %v1719 = vpack.c.b16 %v1659, %v1657
      %v1720 = vpack.c.b16 %v1660, %v1658
      %v1721 = vpack.c.b16 %v1663, %v1661
      %v1722 = vpack.c.b16 %v1664, %v1662
      %v1723 = vpack.c.b16 %v1667, %v1665
      %v1724 = vpack.c.b16 %v1668, %v1666
      %v1725 = vpack.c.b16 %v1671, %v1669
      %v1726 = vpack.c.b16 %v1672, %v1670
      %v1727 = vpack.c.b16 %v1675, %v1673
      %v1728 = vpack.c.b16 %v1676, %v1674
      %v1729 = vpack.c.b16 %v1679, %v1677
      %v1730 = vpack.c.b16 %v1680, %v1678
      %v1731 = vpack.c.b16 %v1683, %v1681
      %v1732 = vpack.c.b16 %v1684, %v1682
      %v1733 = vpack.c.b16 %v1687, %v1685
      %v1734 = vpack.c.b16 %v1688, %v1686
      %v1735 = vpack.c.b16 %v1691, %v1689
      %v1736 = vpack.c.b16 %v1692, %v1690
      %v1737 = vpack.c.b16 %v1695, %v1693
      %v1738 = vpack.c.b16 %v1696, %v1694
      %v1739 = vpack.c.b16 %v1699, %v1697
      %v1740 = vpack.c.b16 %v1700, %v1698
      %v1741 = vpack.c.b16 %v1703, %v1701
      %v1742 = vpack.c.b16 %v1704, %v1702
      %v1743 = vpack.c.b16 %v1707, %v1705
      %v1744 = vpack.c.b16 %v1708, %v1706
      %v1782 = vsel %vm1028, %v1013, 0
      %1784 = vmatprep.subr.bf16.mxu0 %v1710
      %1785 = vmatpush1.bf16.msra.mxu0 %v1709
      %1786 = vmatprep.subr.bf16.mxu0 %v1712
      %1787 = vmatpush1.bf16.msra.mxu0 %v1711
      %1788 = vmatprep.subr.bf16.mxu0 %v1714
      %1789 = vmatpush1.bf16.msra.mxu0 %v1713
      %1790 = vmatprep.subr.bf16.mxu0 %v1716
      %1791 = vmatpush1.bf16.msra.mxu0 %v1715
      %1792 = vmatprep.subr.bf16.mxu0 %v1718
      %1793 = vmatpush1.bf16.msra.mxu0 %v1717
      %1794 = vmatprep.subr.bf16.mxu0 %v1720
      %1795 = vmatpush1.bf16.msra.mxu0 %v1719
      %1796 = vmatprep.subr.bf16.mxu0 %v1722
      %1797 = vmatpush1.bf16.msra.mxu0 %v1721
      %1798 = vmatprep.subr.bf16.mxu0 %v1724
      %1799 = vmatpush1.bf16.msra.mxu0 %v1723
      %1800 = vmatprep.subr.bf16.mxu0 %v1726
      %1801 = vmatpush1.bf16.msra.mxu0 %v1725
      %1802 = vmatprep.subr.bf16.mxu0 %v1728
      %1803 = vmatpush1.bf16.msra.mxu0 %v1727
      %1804 = vmatprep.subr.bf16.mxu0 %v1730
      %1805 = vmatpush1.bf16.msra.mxu0 %v1729
      %1806 = vmatprep.subr.bf16.mxu0 %v1732
      %1807 = vmatpush1.bf16.msra.mxu0 %v1731
      %1808 = vmatprep.subr.bf16.mxu0 %v1734
      %1809 = vmatpush1.bf16.msra.mxu0 %v1733
      %1810 = vmatprep.subr.bf16.mxu0 %v1736
      %1811 = vmatpush1.bf16.msra.mxu0 %v1735
      %1812 = vmatprep.subr.bf16.mxu0 %v1738
      %1813 = vmatpush1.bf16.msra.mxu0 %v1737
      %1814 = vmatprep.subr.bf16.mxu0 %v1740
      %1815 = vmatpush1.bf16.msra.mxu0 %v1739
      %1816 = vmatprep.mubr.bf16.mxu0 %v1012
      %1817 = vmatmul.mubr.bf16.gmra.mrb[0].mxu0 %v1011
      %v1818 = vpop.f32.mrb[0].mxu0
      %v1819 = vadd.f32 0.0, %v1818
      %v1820 = vpop.f32.mrb[0].mxu0
      %v1821 = vadd.f32 0.0, %v1820
      %v1822 = vpop.f32.mrb[0].mxu0
      %v1823 = vadd.f32 0.0, %v1822
      %v1824 = vpop.f32.mrb[0].mxu0
      %v1825 = vadd.f32 0.0, %v1824
      %1826 = vdwg.mxu0
      %1827 = vmatprep.subr.bf16.mxu0 %v1742
      %1828 = vmatpush1.bf16.msra.mxu0 %v1741
      %1829 = vmatprep.subr.bf16.mxu0 %v1744
      %1830 = vmatpush1.bf16.msra.mxu0 %v1743
      %1831 = vmatprep.subr.bf16.mxu0 0
      %1832 = vmatpush1.bf16.msra.mxu0 0
      %1833 = vmatprep.subr.bf16.mxu0 0
      %1834 = vmatpush1.bf16.msra.mxu0 0
      %1835 = vmatprep.subr.bf16.mxu0 0
      %1836 = vmatpush1.bf16.msra.mxu0 0
      %1837 = vmatprep.subr.bf16.mxu0 0
      %1838 = vmatpush1.bf16.msra.mxu0 0
      %1839 = vmatprep.subr.bf16.mxu0 0
      %1840 = vmatpush1.bf16.msra.mxu0 0
      %1841 = vmatprep.subr.bf16.mxu0 0
      %1842 = vmatpush1.bf16.msra.mxu0 0
      %1843 = vmatprep.subr.bf16.mxu0 0
      %1844 = vmatpush1.bf16.msra.mxu0 0
      %1845 = vmatprep.subr.bf16.mxu0 0
      %1846 = vmatpush1.bf16.msra.mxu0 0
      %1847 = vmatprep.subr.bf16.mxu0 0
      %1848 = vmatpush1.bf16.msra.mxu0 0
      %1849 = vmatprep.subr.bf16.mxu0 0
      %1850 = vmatpush1.bf16.msra.mxu0 0
      %1851 = vmatprep.subr.bf16.mxu0 0
      %1852 = vmatpush1.bf16.msra.mxu0 0
      %1853 = vmatprep.subr.bf16.mxu0 0
      %1854 = vmatpush1.bf16.msra.mxu0 0
      %1855 = vmatprep.subr.bf16.mxu0 0
      %1856 = vmatpush1.bf16.msra.mxu0 0
      %1857 = vmatprep.subr.bf16.mxu0 0
      %1858 = vmatpush1.bf16.msra.mxu0 0
      %1859 = vmatprep.mubr.bf16.mxu0 0
      %1860 = vmatmul.mubr.bf16.gmra.mrb[0].mxu0 %v1782
      %v1861 = vpop.f32.mrb[0].mxu0
      %v1862 = vadd.f32 %v1819, %v1861
      %v1863 = vpop.f32.mrb[0].mxu0
      %v1864 = vadd.f32 %v1821, %v1863
      %v1865 = vpop.f32.mrb[0].mxu0
      %v1866 = vadd.f32 %v1823, %v1865
      %v1867 = vpop.f32.mrb[0].mxu0
      %v1868 = vadd.f32 %v1825, %v1867
      %1869 = vdwg.mxu0
      %v1906 = vunpack.c.l.b16 %v1528
      %v1907 = vunpack.c.h.b16 %v1528
      %v1908 = vunpack.c.l.b16 %v1529
      %v1909 = vunpack.c.h.b16 %v1529
      %v1910 = vunpack.c.l.b16 %v1530
      %v1911 = vunpack.c.h.b16 %v1530
      %v1912 = vunpack.c.l.b16 %v1531
      %v1913 = vunpack.c.h.b16 %v1531
      %v1914 = vunpack.c.l.b16 %v1532
      %v1915 = vunpack.c.h.b16 %v1532
      %v1916 = vunpack.c.l.b16 %v1533
      %v1917 = vunpack.c.h.b16 %v1533
      %v1918 = vunpack.c.l.b16 %v1534
      %v1919 = vunpack.c.h.b16 %v1534
      %v1920 = vunpack.c.l.b16 %v1535
      %v1921 = vunpack.c.h.b16 %v1535
      %v1922 = vunpack.c.l.b16 %v1536
      %v1923 = vunpack.c.h.b16 %v1536
      %v1924 = vunpack.c.l.b16 %v1537
      %v1925 = vunpack.c.h.b16 %v1537
      %v1926 = vunpack.c.l.b16 %v1538
      %v1927 = vunpack.c.h.b16 %v1538
      %v1928 = vunpack.c.l.b16 %v1539
      %v1929 = vunpack.c.h.b16 %v1539
      %v1930 = vunpack.c.l.b16 %v1540
      %v1931 = vunpack.c.h.b16 %v1540
      %v1932 = vunpack.c.l.b16 %v1541
      %v1933 = vunpack.c.h.b16 %v1541
      %v1934 = vunpack.c.l.b16 %v1542
      %v1935 = vunpack.c.h.b16 %v1542
      %v1936 = vunpack.c.l.b16 %v1543
      %v1937 = vunpack.c.h.b16 %v1543
      %v1938 = vunpack.c.l.b16 %v1544
      %v1939 = vunpack.c.h.b16 %v1544
      %v1940 = vunpack.c.l.b16 %v1545
      %v1941 = vunpack.c.h.b16 %v1545
      %v1942 = vunpack.c.l.b16 %v1546
      %v1943 = vunpack.c.h.b16 %v1546
      %v1944 = vunpack.c.l.b16 %v1547
      %v1945 = vunpack.c.h.b16 %v1547
      %v1946 = vunpack.c.l.b16 %v1548
      %v1947 = vunpack.c.h.b16 %v1548
      %v1948 = vunpack.c.l.b16 %v1549
      %v1949 = vunpack.c.h.b16 %v1549
      %v1950 = vunpack.c.l.b16 %v1550
      %v1951 = vunpack.c.h.b16 %v1550
      %v1952 = vunpack.c.l.b16 %v1551
      %v1953 = vunpack.c.h.b16 %v1551
      %v1954 = vunpack.c.l.b16 %v1552
      %v1955 = vunpack.c.h.b16 %v1552
      %v1956 = vunpack.c.l.b16 %v1553
      %v1957 = vunpack.c.h.b16 %v1553
      %v1958 = vunpack.c.l.b16 %v1554
      %v1959 = vunpack.c.h.b16 %v1554
      %v1960 = vunpack.c.l.b16 %v1555
      %v1961 = vunpack.c.h.b16 %v1555
      %v1962 = vunpack.c.l.b16 %v1556
      %v1963 = vunpack.c.h.b16 %v1556
      %v1964 = vunpack.c.l.b16 %v1557
      %v1965 = vunpack.c.h.b16 %v1557
      %v1966 = vunpack.c.l.b16 %v1558
      %v1967 = vunpack.c.h.b16 %v1558
      %v1968 = vunpack.c.l.b16 %v1559
      %v1969 = vunpack.c.h.b16 %v1559
      %v1970 = vunpack.c.l.b16 %v1560
      %v1971 = vunpack.c.h.b16 %v1560
      %v1972 = vunpack.c.l.b16 %v1561
      %v1973 = vunpack.c.h.b16 %v1561
      %v1974 = vunpack.c.l.b16 %v1562
      %v1975 = vunpack.c.h.b16 %v1562
      %v1976 = vunpack.c.l.b16 %v1563
      %v1977 = vunpack.c.h.b16 %v1563
      %v1978 = vpack.c.b16 %v1908, %v1906
      %v1979 = vpack.c.b16 %v1909, %v1907
      %v1980 = vpack.c.b16 %v1912, %v1910
      %v1981 = vpack.c.b16 %v1913, %v1911
      %v1982 = vpack.c.b16 %v1916, %v1914
      %v1983 = vpack.c.b16 %v1917, %v1915
      %v1984 = vpack.c.b16 %v1920, %v1918
      %v1985 = vpack.c.b16 %v1921, %v1919
      %v1986 = vpack.c.b16 %v1924, %v1922
      %v1987 = vpack.c.b16 %v1925, %v1923
      %v1988 = vpack.c.b16 %v1928, %v1926
      %v1989 = vpack.c.b16 %v1929, %v1927
      %v1990 = vpack.c.b16 %v1932, %v1930
      %v1991 = vpack.c.b16 %v1933, %v1931
      %v1992 = vpack.c.b16 %v1936, %v1934
      %v1993 = vpack.c.b16 %v1937, %v1935
      %v1994 = vpack.c.b16 %v1940, %v1938
      %v1995 = vpack.c.b16 %v1941, %v1939
      %v1996 = vpack.c.b16 %v1944, %v1942
      %v1997 = vpack.c.b16 %v1945, %v1943
      %v1998 = vpack.c.b16 %v1948, %v1946
      %v1999 = vpack.c.b16 %v1949, %v1947
      %v2000 = vpack.c.b16 %v1952, %v1950
      %v2001 = vpack.c.b16 %v1953, %v1951
      %v2002 = vpack.c.b16 %v1956, %v1954
      %v2003 = vpack.c.b16 %v1957, %v1955
      %v2004 = vpack.c.b16 %v1960, %v1958
      %v2005 = vpack.c.b16 %v1961, %v1959
      %v2006 = vpack.c.b16 %v1964, %v1962
      %v2007 = vpack.c.b16 %v1965, %v1963
      %v2008 = vpack.c.b16 %v1968, %v1966
      %v2009 = vpack.c.b16 %v1969, %v1967
      %v2010 = vpack.c.b16 %v1972, %v1970
      %v2011 = vpack.c.b16 %v1973, %v1971
      %v2012 = vpack.c.b16 %v1976, %v1974
      %v2013 = vpack.c.b16 %v1977, %v1975
      %v2051 = vsel %vm1028, %v1429, 0
      %2053 = vmatprep.subr.bf16.mxu0 %v1979
      %2054 = vmatpush1.bf16.msra.mxu0 %v1978
      %2055 = vmatprep.subr.bf16.mxu0 %v1981
      %2056 = vmatpush1.bf16.msra.mxu0 %v1980
      %2057 = vmatprep.subr.bf16.mxu0 %v1983
      %2058 = vmatpush1.bf16.msra.mxu0 %v1982
      %2059 = vmatprep.subr.bf16.mxu0 %v1985
      %2060 = vmatpush1.bf16.msra.mxu0 %v1984
      %2061 = vmatprep.subr.bf16.mxu0 %v1987
      %2062 = vmatpush1.bf16.msra.mxu0 %v1986
      %2063 = vmatprep.subr.bf16.mxu0 %v1989
      %2064 = vmatpush1.bf16.msra.mxu0 %v1988
      %2065 = vmatprep.subr.bf16.mxu0 %v1991
      %2066 = vmatpush1.bf16.msra.mxu0 %v1990
      %2067 = vmatprep.subr.bf16.mxu0 %v1993
      %2068 = vmatpush1.bf16.msra.mxu0 %v1992
      %2069 = vmatprep.subr.bf16.mxu0 %v1995
      %2070 = vmatpush1.bf16.msra.mxu0 %v1994
      %2071 = vmatprep.subr.bf16.mxu0 %v1997
      %2072 = vmatpush1.bf16.msra.mxu0 %v1996
      %2073 = vmatprep.subr.bf16.mxu0 %v1999
      %2074 = vmatpush1.bf16.msra.mxu0 %v1998
      %2075 = vmatprep.subr.bf16.mxu0 %v2001
      %2076 = vmatpush1.bf16.msra.mxu0 %v2000
      %2077 = vmatprep.subr.bf16.mxu0 %v2003
      %2078 = vmatpush1.bf16.msra.mxu0 %v2002
      %2079 = vmatprep.subr.bf16.mxu0 %v2005
      %2080 = vmatpush1.bf16.msra.mxu0 %v2004
      %2081 = vmatprep.subr.bf16.mxu0 %v2007
      %2082 = vmatpush1.bf16.msra.mxu0 %v2006
      %2083 = vmatprep.subr.bf16.mxu0 %v2009
      %2084 = vmatpush1.bf16.msra.mxu0 %v2008
      %2085 = vmatprep.mubr.bf16.mxu0 %v1428
      %2086 = vmatmul.mubr.bf16.gmra.mrb[0].mxu0 %v1427
      %v2087 = vpop.f32.mrb[0].mxu0
      %v2088 = vadd.f32 %v1862, %v2087
      %v2089 = vpop.f32.mrb[0].mxu0
      %v2090 = vadd.f32 %v1864, %v2089
      %v2091 = vpop.f32.mrb[0].mxu0
      %v2092 = vadd.f32 %v1866, %v2091
      %v2093 = vpop.f32.mrb[0].mxu0
      %v2094 = vadd.f32 %v1868, %v2093
      %2095 = vdwg.mxu0
      %2096 = vmatprep.subr.bf16.mxu0 %v2011
      %2097 = vmatpush1.bf16.msra.mxu0 %v2010
      %2098 = vmatprep.subr.bf16.mxu0 %v2013
      %2099 = vmatpush1.bf16.msra.mxu0 %v2012
      %2100 = vmatprep.subr.bf16.mxu0 0
      %2101 = vmatpush1.bf16.msra.mxu0 0
      %2102 = vmatprep.subr.bf16.mxu0 0
      %2103 = vmatpush1.bf16.msra.mxu0 0
      %2104 = vmatprep.subr.bf16.mxu0 0
      %2105 = vmatpush1.bf16.msra.mxu0 0
      %2106 = vmatprep.subr.bf16.mxu0 0
      %2107 = vmatpush1.bf16.msra.mxu0 0
      %2108 = vmatprep.subr.bf16.mxu0 0
      %2109 = vmatpush1.bf16.msra.mxu0 0
      %2110 = vmatprep.subr.bf16.mxu0 0
      %2111 = vmatpush1.bf16.msra.mxu0 0
      %2112 = vmatprep.subr.bf16.mxu0 0
      %2113 = vmatpush1.bf16.msra.mxu0 0
      %2114 = vmatprep.subr.bf16.mxu0 0
      %2115 = vmatpush1.bf16.msra.mxu0 0
      %2116 = vmatprep.subr.bf16.mxu0 0
      %2117 = vmatpush1.bf16.msra.mxu0 0
      %2118 = vmatprep.subr.bf16.mxu0 0
      %2119 = vmatpush1.bf16.msra.mxu0 0
      %2120 = vmatprep.subr.bf16.mxu0 0
      %2121 = vmatpush1.bf16.msra.mxu0 0
      %2122 = vmatprep.subr.bf16.mxu0 0
      %2123 = vmatpush1.bf16.msra.mxu0 0
      %2124 = vmatprep.subr.bf16.mxu0 0
      %2125 = vmatpush1.bf16.msra.mxu0 0
      %2126 = vmatprep.subr.bf16.mxu0 0
      %2127 = vmatpush1.bf16.msra.mxu0 0
      %2128 = vmatprep.mubr.bf16.mxu0 0
      %2129 = vmatmul.mubr.bf16.gmra.mrb[0].mxu0 %v2051
      %v2130 = vpop.f32.mrb[0].mxu0
      %v2131 = vadd.f32 %v2088, %v2130
      %v2132 = vpop.f32.mrb[0].mxu0
      %v2133 = vadd.f32 %v2090, %v2132
      %v2134 = vpop.f32.mrb[0].mxu0
      %v2135 = vadd.f32 %v2092, %v2134
      %v2136 = vpop.f32.mrb[0].mxu0
      %v2137 = vadd.f32 %v2094, %v2136
      %2138 = vdwg.mxu0
      %s2139 = scalar_lea.vmem %s4, 576
      %v2140 = vld [vmem:[%s2139] sm:$0xff]
      %v2141 = vld [vmem:[%s2139 + $0x8] sm:$0xff]
      %v2142 = vld [vmem:[%s2139 + $0x10] sm:$0xff]
      %v2143 = vld [vmem:[%s2139 + $0x18] sm:$0xff]
      %v2144 = vld [vmem:[%s2139 + $0x20] sm:$0xff]
      %v2145 = vld [vmem:[%s2139 + $0x28] sm:$0xff]
      %v2146 = vld [vmem:[%s2139 + $0x30] sm:$0xff]
      %v2147 = vld [vmem:[%s2139 + $0x38] sm:$0xff]
      %v2148 = vld [vmem:[%s2139 + $0x40] sm:$0xff]
      %v2149 = vld [vmem:[%s2139 + $0x48] sm:$0xff]
      %v2150 = vld [vmem:[%s2139 + $0x50] sm:$0xff]
      %v2151 = vld [vmem:[%s2139 + $0x58] sm:$0xff]
      %v2152 = vld [vmem:[%s2139 + $0x60] sm:$0xff]
      %v2153 = vld [vmem:[%s2139 + $0x68] sm:$0xff]
      %v2154 = vld [vmem:[%s2139 + $0x70] sm:$0xff]
      %v2155 = vld [vmem:[%s2139 + $0x78] sm:$0xff]
      %v2156 = vld [vmem:[%s2139 + $0x80] sm:$0xff]
      %v2157 = vld [vmem:[%s2139 + $0x88] sm:$0xff]
      %v2158 = vld [vmem:[%s2139 + $0x90] sm:$0xff]
      %v2159 = vld [vmem:[%s2139 + $0x98] sm:$0xff]
      %v2160 = vld [vmem:[%s2139 + $0xa0] sm:$0xff]
      %v2161 = vld [vmem:[%s2139 + $0xa8] sm:$0xff]
      %v2162 = vld [vmem:[%s2139 + $0xb0] sm:$0xff]
      %v2163 = vld [vmem:[%s2139 + $0xb8] sm:$0xff]
      %v2164 = vld [vmem:[%s2139 + $0xc0] sm:$0xff]
      %v2165 = vld [vmem:[%s2139 + $0xc8] sm:$0xff]
      %v2166 = vld [vmem:[%s2139 + $0xd0] sm:$0xff]
      %v2167 = vld [vmem:[%s2139 + $0xd8] sm:$0xff]
      %v2168 = vld [vmem:[%s2139 + $0xe0] sm:$0xff]
      %v2169 = vld [vmem:[%s2139 + $0xe8] sm:$0xff]
      %v2170 = vld [vmem:[%s2139 + $0xf0] sm:$0xff]
      %v2171 = vld [vmem:[%s2139 + $0xf8] sm:$0xff]
      %v2172 = vld [vmem:[%s2139 + $0x100] sm:$0xff]
      %v2173 = vld [vmem:[%s2139 + $0x108] sm:$0xff]
      %v2174 = vld [vmem:[%s2139 + $0x110] sm:$0xff]
      %v2175 = vld [vmem:[%s2139 + $0x118] sm:$0xff]
      %v2212 = vunpack.c.l.b16 %v2140
      %v2213 = vunpack.c.h.b16 %v2140
      %v2214 = vunpack.c.l.b16 %v2141
      %v2215 = vunpack.c.h.b16 %v2141
      %v2216 = vunpack.c.l.b16 %v2142
      %v2217 = vunpack.c.h.b16 %v2142
      %v2218 = vunpack.c.l.b16 %v2143
      %v2219 = vunpack.c.h.b16 %v2143
      %v2220 = vunpack.c.l.b16 %v2144
      %v2221 = vunpack.c.h.b16 %v2144
      %v2222 = vunpack.c.l.b16 %v2145
      %v2223 = vunpack.c.h.b16 %v2145
      %v2224 = vunpack.c.l.b16 %v2146
      %v2225 = vunpack.c.h.b16 %v2146
      %v2226 = vunpack.c.l.b16 %v2147
      %v2227 = vunpack.c.h.b16 %v2147
      %v2228 = vunpack.c.l.b16 %v2148
      %v2229 = vunpack.c.h.b16 %v2148
      %v2230 = vunpack.c.l.b16 %v2149
      %v2231 = vunpack.c.h.b16 %v2149
      %v2232 = vunpack.c.l.b16 %v2150
      %v2233 = vunpack.c.h.b16 %v2150
      %v2234 = vunpack.c.l.b16 %v2151
      %v2235 = vunpack.c.h.b16 %v2151
      %v2236 = vunpack.c.l.b16 %v2152
      %v2237 = vunpack.c.h.b16 %v2152
      %v2238 = vunpack.c.l.b16 %v2153
      %v2239 = vunpack.c.h.b16 %v2153
      %v2240 = vunpack.c.l.b16 %v2154
      %v2241 = vunpack.c.h.b16 %v2154
      %v2242 = vunpack.c.l.b16 %v2155
      %v2243 = vunpack.c.h.b16 %v2155
      %v2244 = vunpack.c.l.b16 %v2156
      %v2245 = vunpack.c.h.b16 %v2156
      %v2246 = vunpack.c.l.b16 %v2157
      %v2247 = vunpack.c.h.b16 %v2157
      %v2248 = vunpack.c.l.b16 %v2158
      %v2249 = vunpack.c.h.b16 %v2158
      %v2250 = vunpack.c.l.b16 %v2159
      %v2251 = vunpack.c.h.b16 %v2159
      %v2252 = vunpack.c.l.b16 %v2160
      %v2253 = vunpack.c.h.b16 %v2160
      %v2254 = vunpack.c.l.b16 %v2161
      %v2255 = vunpack.c.h.b16 %v2161
      %v2256 = vunpack.c.l.b16 %v2162
      %v2257 = vunpack.c.h.b16 %v2162
      %v2258 = vunpack.c.l.b16 %v2163
      %v2259 = vunpack.c.h.b16 %v2163
      %v2260 = vunpack.c.l.b16 %v2164
      %v2261 = vunpack.c.h.b16 %v2164
      %v2262 = vunpack.c.l.b16 %v2165
      %v2263 = vunpack.c.h.b16 %v2165
      %v2264 = vunpack.c.l.b16 %v2166
      %v2265 = vunpack.c.h.b16 %v2166
      %v2266 = vunpack.c.l.b16 %v2167
      %v2267 = vunpack.c.h.b16 %v2167
      %v2268 = vunpack.c.l.b16 %v2168
      %v2269 = vunpack.c.h.b16 %v2168
      %v2270 = vunpack.c.l.b16 %v2169
      %v2271 = vunpack.c.h.b16 %v2169
      %v2272 = vunpack.c.l.b16 %v2170
      %v2273 = vunpack.c.h.b16 %v2170
      %v2274 = vunpack.c.l.b16 %v2171
      %v2275 = vunpack.c.h.b16 %v2171
      %v2276 = vunpack.c.l.b16 %v2172
      %v2277 = vunpack.c.h.b16 %v2172
      %v2278 = vunpack.c.l.b16 %v2173
      %v2279 = vunpack.c.h.b16 %v2173
      %v2280 = vunpack.c.l.b16 %v2174
      %v2281 = vunpack.c.h.b16 %v2174
      %v2282 = vunpack.c.l.b16 %v2175
      %v2283 = vunpack.c.h.b16 %v2175
      %v2284 = vpack.c.b16 %v2214, %v2212
      %v2285 = vpack.c.b16 %v2215, %v2213
      %v2286 = vpack.c.b16 %v2218, %v2216
      %v2287 = vpack.c.b16 %v2219, %v2217
      %v2288 = vpack.c.b16 %v2222, %v2220
      %v2289 = vpack.c.b16 %v2223, %v2221
      %v2290 = vpack.c.b16 %v2226, %v2224
      %v2291 = vpack.c.b16 %v2227, %v2225
      %v2292 = vpack.c.b16 %v2230, %v2228
      %v2293 = vpack.c.b16 %v2231, %v2229
      %v2294 = vpack.c.b16 %v2234, %v2232
      %v2295 = vpack.c.b16 %v2235, %v2233
      %v2296 = vpack.c.b16 %v2238, %v2236
      %v2297 = vpack.c.b16 %v2239, %v2237
      %v2298 = vpack.c.b16 %v2242, %v2240
      %v2299 = vpack.c.b16 %v2243, %v2241
      %v2300 = vpack.c.b16 %v2246, %v2244
      %v2301 = vpack.c.b16 %v2247, %v2245
      %v2302 = vpack.c.b16 %v2250, %v2248
      %v2303 = vpack.c.b16 %v2251, %v2249
      %v2304 = vpack.c.b16 %v2254, %v2252
      %v2305 = vpack.c.b16 %v2255, %v2253
      %v2306 = vpack.c.b16 %v2258, %v2256
      %v2307 = vpack.c.b16 %v2259, %v2257
      %v2308 = vpack.c.b16 %v2262, %v2260
      %v2309 = vpack.c.b16 %v2263, %v2261
      %v2310 = vpack.c.b16 %v2266, %v2264
      %v2311 = vpack.c.b16 %v2267, %v2265
      %v2312 = vpack.c.b16 %v2270, %v2268
      %v2313 = vpack.c.b16 %v2271, %v2269
      %v2314 = vpack.c.b16 %v2274, %v2272
      %v2315 = vpack.c.b16 %v2275, %v2273
      %v2316 = vpack.c.b16 %v2278, %v2276
      %v2317 = vpack.c.b16 %v2279, %v2277
      %v2318 = vpack.c.b16 %v2282, %v2280
      %v2319 = vpack.c.b16 %v2283, %v2281
      %v2357 = vsel %vm1028, %v1527, 0
      %2359 = vmatprep.subr.bf16.mxu0 %v2285
      %2360 = vmatpush1.bf16.msra.mxu0 %v2284
      %2361 = vmatprep.subr.bf16.mxu0 %v2287
      %2362 = vmatpush1.bf16.msra.mxu0 %v2286
      %2363 = vmatprep.subr.bf16.mxu0 %v2289
      %2364 = vmatpush1.bf16.msra.mxu0 %v2288
      %2365 = vmatprep.subr.bf16.mxu0 %v2291
      %2366 = vmatpush1.bf16.msra.mxu0 %v2290
      %2367 = vmatprep.subr.bf16.mxu0 %v2293
      %2368 = vmatpush1.bf16.msra.mxu0 %v2292
      %2369 = vmatprep.subr.bf16.mxu0 %v2295
      %2370 = vmatpush1.bf16.msra.mxu0 %v2294
      %2371 = vmatprep.subr.bf16.mxu0 %v2297
      %2372 = vmatpush1.bf16.msra.mxu0 %v2296
      %2373 = vmatprep.subr.bf16.mxu0 %v2299
      %2374 = vmatpush1.bf16.msra.mxu0 %v2298
      %2375 = vmatprep.subr.bf16.mxu0 %v2301
      %2376 = vmatpush1.bf16.msra.mxu0 %v2300
      %2377 = vmatprep.subr.bf16.mxu0 %v2303
      %2378 = vmatpush1.bf16.msra.mxu0 %v2302
      %2379 = vmatprep.subr.bf16.mxu0 %v2305
      %2380 = vmatpush1.bf16.msra.mxu0 %v2304
      %2381 = vmatprep.subr.bf16.mxu0 %v2307
      %2382 = vmatpush1.bf16.msra.mxu0 %v2306
      %2383 = vmatprep.subr.bf16.mxu0 %v2309
      %2384 = vmatpush1.bf16.msra.mxu0 %v2308
      %2385 = vmatprep.subr.bf16.mxu0 %v2311
      %2386 = vmatpush1.bf16.msra.mxu0 %v2310
      %2387 = vmatprep.subr.bf16.mxu0 %v2313
      %2388 = vmatpush1.bf16.msra.mxu0 %v2312
      %2389 = vmatprep.subr.bf16.mxu0 %v2315
      %2390 = vmatpush1.bf16.msra.mxu0 %v2314
      %2391 = vmatprep.mubr.bf16.mxu0 %v1526
      %2392 = vmatmul.mubr.bf16.gmra.mrb[0].mxu0 %v1525
      %v2393 = vpop.f32.mrb[0].mxu0
      %v2394 = vadd.f32 0.0, %v2393
      %v2395 = vpop.f32.mrb[0].mxu0
      %v2396 = vadd.f32 0.0, %v2395
      %v2397 = vpop.f32.mrb[0].mxu0
      %v2398 = vadd.f32 0.0, %v2397
      %v2399 = vpop.f32.mrb[0].mxu0
      %v2400 = vadd.f32 0.0, %v2399
      %2401 = vdwg.mxu0
      %2402 = vmatprep.subr.bf16.mxu0 %v2317
      %2403 = vmatpush1.bf16.msra.mxu0 %v2316
      %2404 = vmatprep.subr.bf16.mxu0 %v2319
      %2405 = vmatpush1.bf16.msra.mxu0 %v2318
      %2406 = vmatprep.subr.bf16.mxu0 0
      %2407 = vmatpush1.bf16.msra.mxu0 0
      %2408 = vmatprep.subr.bf16.mxu0 0
      %2409 = vmatpush1.bf16.msra.mxu0 0
      %2410 = vmatprep.subr.bf16.mxu0 0
      %2411 = vmatpush1.bf16.msra.mxu0 0
      %2412 = vmatprep.subr.bf16.mxu0 0
      %2413 = vmatpush1.bf16.msra.mxu0 0
      %2414 = vmatprep.subr.bf16.mxu0 0
      %2415 = vmatpush1.bf16.msra.mxu0 0
      %2416 = vmatprep.subr.bf16.mxu0 0
      %2417 = vmatpush1.bf16.msra.mxu0 0
      %2418 = vmatprep.subr.bf16.mxu0 0
      %2419 = vmatpush1.bf16.msra.mxu0 0
      %2420 = vmatprep.subr.bf16.mxu0 0
      %2421 = vmatpush1.bf16.msra.mxu0 0
      %2422 = vmatprep.subr.bf16.mxu0 0
      %2423 = vmatpush1.bf16.msra.mxu0 0
      %2424 = vmatprep.subr.bf16.mxu0 0
      %2425 = vmatpush1.bf16.msra.mxu0 0
      %2426 = vmatprep.subr.bf16.mxu0 0
      %2427 = vmatpush1.bf16.msra.mxu0 0
      %2428 = vmatprep.subr.bf16.mxu0 0
      %2429 = vmatpush1.bf16.msra.mxu0 0
      %2430 = vmatprep.subr.bf16.mxu0 0
      %2431 = vmatpush1.bf16.msra.mxu0 0
      %2432 = vmatprep.subr.bf16.mxu0 0
      %2433 = vmatpush1.bf16.msra.mxu0 0
      %2434 = vmatprep.mubr.bf16.mxu0 0
      %2435 = vmatmul.mubr.bf16.gmra.mrb[0].mxu0 %v2357
      %v2436 = vpop.f32.mrb[0].mxu0
      %v2437 = vadd.f32 %v2394, %v2436
      %v2438 = vpop.f32.mrb[0].mxu0
      %v2439 = vadd.f32 %v2396, %v2438
      %v2440 = vpop.f32.mrb[0].mxu0
      %v2441 = vadd.f32 %v2398, %v2440
      %v2442 = vpop.f32.mrb[0].mxu0
      %v2443 = vadd.f32 %v2400, %v2442
      %2444 = vdwg.mxu0
      %v2445 = vadd.f32 %v2131, %v2437
      %v2446 = vadd.f32 %v2133, %v2439
      %v2447 = vadd.f32 %v2135, %v2441
      %v2448 = vadd.f32 %v2137, %v2443
      %v2449 = vld [vmem:[%s5] sm:$0x3]
      %v2451 = vlaneseq
      %v2452 = vshrl.u32 %v2451, 7
      %v2453 = vsub.s32 0, %v2452
      %v2454 = vrot.slane %v2449, %v2453
      %v2455 = vlaneseq
      %v2456 = vshrl.u32 %v2455, 7
      %v2457 = vsub.s32 1, %v2456
      %v2458 = vrot.slane %v2449, %v2457
      %v2461 = vadd.f32 %v2445, %v2454
      %v2462 = vadd.f32 %v2446, %v2458
      %v2463 = vadd.f32 %v2447, %v2454
      %v2464 = vadd.f32 %v2448, %v2458
      %v2465 = vmax.f32 %v2461, 0.0
      %v2466 = vmax.f32 %v2462, 0.0
      %v2467 = vmax.f32 %v2463, 0.0
      %v2468 = vmax.f32 %v2464, 0.0
      %v2469 = vpack.c.bf16 %v2467, %v2465
      %v2470 = vpack.c.bf16 %v2468, %v2466
      %v2471 = vld [vmem:[%s6] sm:$0xff]
      %v2472 = vld [vmem:[%s6 + $0x8] sm:$0xff]
      %v2473 = vld [vmem:[%s6 + $0x10] sm:$0xff]
      %v2474 = vld [vmem:[%s6 + $0x18] sm:$0xff]
      %v2475 = vld [vmem:[%s6 + $0x20] sm:$0xff]
      %v2476 = vld [vmem:[%s6 + $0x28] sm:$0xff]
      %v2477 = vld [vmem:[%s6 + $0x30] sm:$0xff]
      %v2478 = vld [vmem:[%s6 + $0x38] sm:$0xff]
      %v2479 = vld [vmem:[%s6 + $0x40] sm:$0xff]
      %v2480 = vld [vmem:[%s6 + $0x48] sm:$0xff]
      %v2481 = vld [vmem:[%s6 + $0x50] sm:$0xff]
      %v2482 = vld [vmem:[%s6 + $0x58] sm:$0xff]
      %v2483 = vld [vmem:[%s6 + $0x60] sm:$0xff]
      %v2484 = vld [vmem:[%s6 + $0x68] sm:$0xff]
      %v2485 = vld [vmem:[%s6 + $0x70] sm:$0xff]
      %v2486 = vld [vmem:[%s6 + $0x78] sm:$0xff]
      %v2487 = vld [vmem:[%s6 + $0x80] sm:$0xff]
      %v2488 = vld [vmem:[%s6 + $0x88] sm:$0xff]
      %v2489 = vld [vmem:[%s6 + $0x90] sm:$0xff]
      %v2490 = vld [vmem:[%s6 + $0x98] sm:$0xff]
      %v2491 = vld [vmem:[%s6 + $0xa0] sm:$0xff]
      %v2492 = vld [vmem:[%s6 + $0xa8] sm:$0xff]
      %v2493 = vld [vmem:[%s6 + $0xb0] sm:$0xff]
      %v2494 = vld [vmem:[%s6 + $0xb8] sm:$0xff]
      %v2495 = vld [vmem:[%s6 + $0xc0] sm:$0xff]
      %v2496 = vld [vmem:[%s6 + $0xc8] sm:$0xff]
      %v2497 = vld [vmem:[%s6 + $0xd0] sm:$0xff]
      %v2498 = vld [vmem:[%s6 + $0xd8] sm:$0xff]
      %v2499 = vld [vmem:[%s6 + $0xe0] sm:$0xff]
      %v2500 = vld [vmem:[%s6 + $0xe8] sm:$0xff]
      %v2501 = vld [vmem:[%s6 + $0xf0] sm:$0xff]
      %v2502 = vld [vmem:[%s6 + $0xf8] sm:$0xff]
      %v2503 = vld [vmem:[%s7] sm:$0x3]
      %v2505 = vlaneseq
      %v2506 = vshrl.u32 %v2505, 7
      %v2507 = vsub.s32 0, %v2506
      %v2508 = vrot.slane %v2503, %v2507
      %v2509 = vlaneseq
      %v2510 = vshrl.u32 %v2509, 7
      %v2511 = vsub.s32 1, %v2510
      %v2512 = vrot.slane %v2503, %v2511
      %v2547 = vunpack.c.l.b16 %v2471
      %v2548 = vunpack.c.h.b16 %v2471
      %v2549 = vunpack.c.l.b16 %v2472
      %v2550 = vunpack.c.h.b16 %v2472
      %v2551 = vunpack.c.l.b16 %v2473
      %v2552 = vunpack.c.h.b16 %v2473
      %v2553 = vunpack.c.l.b16 %v2474
      %v2554 = vunpack.c.h.b16 %v2474
      %v2555 = vunpack.c.l.b16 %v2475
      %v2556 = vunpack.c.h.b16 %v2475
      %v2557 = vunpack.c.l.b16 %v2476
      %v2558 = vunpack.c.h.b16 %v2476
      %v2559 = vunpack.c.l.b16 %v2477
      %v2560 = vunpack.c.h.b16 %v2477
      %v2561 = vunpack.c.l.b16 %v2478
      %v2562 = vunpack.c.h.b16 %v2478
      %v2563 = vunpack.c.l.b16 %v2479
      %v2564 = vunpack.c.h.b16 %v2479
      %v2565 = vunpack.c.l.b16 %v2480
      %v2566 = vunpack.c.h.b16 %v2480
      %v2567 = vunpack.c.l.b16 %v2481
      %v2568 = vunpack.c.h.b16 %v2481
      %v2569 = vunpack.c.l.b16 %v2482
      %v2570 = vunpack.c.h.b16 %v2482
      %v2571 = vunpack.c.l.b16 %v2483
      %v2572 = vunpack.c.h.b16 %v2483
      %v2573 = vunpack.c.l.b16 %v2484
      %v2574 = vunpack.c.h.b16 %v2484
      %v2575 = vunpack.c.l.b16 %v2485
      %v2576 = vunpack.c.h.b16 %v2485
      %v2577 = vunpack.c.l.b16 %v2486
      %v2578 = vunpack.c.h.b16 %v2486
      %v2579 = vunpack.c.l.b16 %v2487
      %v2580 = vunpack.c.h.b16 %v2487
      %v2581 = vunpack.c.l.b16 %v2488
      %v2582 = vunpack.c.h.b16 %v2488
      %v2583 = vunpack.c.l.b16 %v2489
      %v2584 = vunpack.c.h.b16 %v2489
      %v2585 = vunpack.c.l.b16 %v2490
      %v2586 = vunpack.c.h.b16 %v2490
      %v2587 = vunpack.c.l.b16 %v2491
      %v2588 = vunpack.c.h.b16 %v2491
      %v2589 = vunpack.c.l.b16 %v2492
      %v2590 = vunpack.c.h.b16 %v2492
      %v2591 = vunpack.c.l.b16 %v2493
      %v2592 = vunpack.c.h.b16 %v2493
      %v2593 = vunpack.c.l.b16 %v2494
      %v2594 = vunpack.c.h.b16 %v2494
      %v2595 = vunpack.c.l.b16 %v2495
      %v2596 = vunpack.c.h.b16 %v2495
      %v2597 = vunpack.c.l.b16 %v2496
      %v2598 = vunpack.c.h.b16 %v2496
      %v2599 = vunpack.c.l.b16 %v2497
      %v2600 = vunpack.c.h.b16 %v2497
      %v2601 = vunpack.c.l.b16 %v2498
      %v2602 = vunpack.c.h.b16 %v2498
      %v2603 = vunpack.c.l.b16 %v2499
      %v2604 = vunpack.c.h.b16 %v2499
      %v2605 = vunpack.c.l.b16 %v2500
      %v2606 = vunpack.c.h.b16 %v2500
      %v2607 = vunpack.c.l.b16 %v2501
      %v2608 = vunpack.c.h.b16 %v2501
      %v2609 = vunpack.c.l.b16 %v2502
      %v2610 = vunpack.c.h.b16 %v2502
      %v2611 = vpack.c.b16 %v2549, %v2547
      %v2612 = vpack.c.b16 %v2550, %v2548
      %v2613 = vpack.c.b16 %v2553, %v2551
      %v2614 = vpack.c.b16 %v2554, %v2552
      %v2615 = vpack.c.b16 %v2557, %v2555
      %v2616 = vpack.c.b16 %v2558, %v2556
      %v2617 = vpack.c.b16 %v2561, %v2559
      %v2618 = vpack.c.b16 %v2562, %v2560
      %v2619 = vpack.c.b16 %v2565, %v2563
      %v2620 = vpack.c.b16 %v2566, %v2564
      %v2621 = vpack.c.b16 %v2569, %v2567
      %v2622 = vpack.c.b16 %v2570, %v2568
      %v2623 = vpack.c.b16 %v2573, %v2571
      %v2624 = vpack.c.b16 %v2574, %v2572
      %v2625 = vpack.c.b16 %v2577, %v2575
      %v2626 = vpack.c.b16 %v2578, %v2576
      %v2627 = vpack.c.b16 %v2581, %v2579
      %v2628 = vpack.c.b16 %v2582, %v2580
      %v2629 = vpack.c.b16 %v2585, %v2583
      %v2630 = vpack.c.b16 %v2586, %v2584
      %v2631 = vpack.c.b16 %v2589, %v2587
      %v2632 = vpack.c.b16 %v2590, %v2588
      %v2633 = vpack.c.b16 %v2593, %v2591
      %v2634 = vpack.c.b16 %v2594, %v2592
      %v2635 = vpack.c.b16 %v2597, %v2595
      %v2636 = vpack.c.b16 %v2598, %v2596
      %v2637 = vpack.c.b16 %v2601, %v2599
      %v2638 = vpack.c.b16 %v2602, %v2600
      %v2639 = vpack.c.b16 %v2605, %v2603
      %v2640 = vpack.c.b16 %v2606, %v2604
      %v2641 = vpack.c.b16 %v2609, %v2607
      %v2642 = vpack.c.b16 %v2610, %v2608
      %2675 = vmatprep.subr.bf16.mxu0 %v2612
      %2676 = vmatpush1.bf16.msra.mxu0 %v2611
      %2677 = vmatprep.subr.bf16.mxu0 %v2614
      %2678 = vmatpush1.bf16.msra.mxu0 %v2613
      %2679 = vmatprep.subr.bf16.mxu0 %v2616
      %2680 = vmatpush1.bf16.msra.mxu0 %v2615
      %2681 = vmatprep.subr.bf16.mxu0 %v2618
      %2682 = vmatpush1.bf16.msra.mxu0 %v2617
      %2683 = vmatprep.subr.bf16.mxu0 %v2620
      %2684 = vmatpush1.bf16.msra.mxu0 %v2619
      %2685 = vmatprep.subr.bf16.mxu0 %v2622
      %2686 = vmatpush1.bf16.msra.mxu0 %v2621
      %2687 = vmatprep.subr.bf16.mxu0 %v2624
      %2688 = vmatpush1.bf16.msra.mxu0 %v2623
      %2689 = vmatprep.subr.bf16.mxu0 %v2626
      %2690 = vmatpush1.bf16.msra.mxu0 %v2625
      %2691 = vmatprep.subr.bf16.mxu0 %v2628
      %2692 = vmatpush1.bf16.msra.mxu0 %v2627
      %2693 = vmatprep.subr.bf16.mxu0 %v2630
      %2694 = vmatpush1.bf16.msra.mxu0 %v2629
      %2695 = vmatprep.subr.bf16.mxu0 %v2632
      %2696 = vmatpush1.bf16.msra.mxu0 %v2631
      %2697 = vmatprep.subr.bf16.mxu0 %v2634
      %2698 = vmatpush1.bf16.msra.mxu0 %v2633
      %2699 = vmatprep.subr.bf16.mxu0 %v2636
      %2700 = vmatpush1.bf16.msra.mxu0 %v2635
      %2701 = vmatprep.subr.bf16.mxu0 %v2638
      %2702 = vmatpush1.bf16.msra.mxu0 %v2637
      %2703 = vmatprep.subr.bf16.mxu0 %v2640
      %2704 = vmatpush1.bf16.msra.mxu0 %v2639
      %2705 = vmatprep.subr.bf16.mxu0 %v2642
      %2706 = vmatpush1.bf16.msra.mxu0 %v2641
      %2707 = vmatprep.mubr.bf16.mxu0 %v2470
      %2708 = vmatmul.mubr.bf16.gmra.mrb[0].mxu0 %v2469
      %v2709 = vpop.f32.mrb[0].mxu0
      %v2710 = vadd.f32 %v2508, %v2709
      %v2711 = vpop.f32.mrb[0].mxu0
      %v2712 = vadd.f32 %v2512, %v2711
      %v2713 = vpop.f32.mrb[0].mxu0
      %v2714 = vadd.f32 %v2508, %v2713
      %v2715 = vpop.f32.mrb[0].mxu0
      %v2716 = vadd.f32 %v2512, %v2715
      %2717 = vdwg.mxu0
      %2718 = vst [vmem:[%s446] sm:$0xff] %v2710
      %2719 = vst [vmem:[%s446 + $0x8] sm:$0xff] %v2712
      %2720 = vst [vmem:[%s446 + $0x10] sm:$0xff] %v2714
      %2721 = vst [vmem:[%s446 + $0x18] sm:$0xff] %v2716
      %p2722 = scmp.lt.s32.totalorder %s25, 1
      %s2723 = scalar_select %p2722, %s25, 1
      %s2724 = smul.addr %s2723, 4
      %s2725 = smul.addr %s2724, 8
      %s2726 = scalar_lea.vmem %s12, %s2725
      %p2727 = scmp.lt.s32.totalorder %s25, 1
      %s2728 = scalar_select %p2727, %s25, 1
      %s2729 = scalar_lea.vmem %s13, %s2728
      // Predicated region
      $region69: #{forward.1} parent=67 // pred_check
        %p2730 = pneg %p300
      $region70: #{forward.1} parent=67 // pred_check_branch
        %2732 = sbr.rel (%p2730) target = $region72
      $region71: #{forward.1} parent=67 // pred_region
        _
      $region72: #{forward.1} parent=67 // pred_fallthru
        _
      // Predicated region
      $region73: #{forward.1} parent=67 // pred_check
        %p2733 = pneg %p326
      $region74: #{forward.1} parent=67 // pred_check_branch
        %2735 = sbr.rel (%p2733) target = $region76
      $region75: #{forward.1} parent=67 // pred_region
        _
      $region76: #{forward.1} parent=67 // pred_fallthru
        _
    $region68: #{forward.1} parent=5 // pred_fallthru
      _
    %p2736 = scmp.le.s32.totalorder 2, %s20
    // Predicated region
    $region77: #{forward.1} parent=5 // pred_check
      %p2737 = pneg %p2736
    $region78: #{forward.1} parent=5 // pred_check_branch
      %2739 = sbr.rel (%p2737) target = $region80
    $region79: #{forward.1} parent=5 // pred_region
      %s2740 = ssub.s32 %s20, 2
      // Predicated region
      $region81: #{forward.1} parent=79 // pred_check
        %p2741 = pneg %p306
      $region82: #{forward.1} parent=79 // pred_check_branch
        %2743 = sbr.rel (%p2741) target = $region84
      $region83: #{forward.1} parent=79 // pred_region
        %p2744 = scmp.lt.s32.totalorder %s26, 1
        %s2745 = scalar_select %p2744, %s26, 1
        %s2746 = smul.addr %s2745, 4
        %s2747 = smul.addr %s2746, 8
        %s2748 = scalar_lea.vmem %s12, %s2747
      $region84: #{forward.1} parent=79 // pred_fallthru
        _
      // Predicated region
      $region85: #{forward.1} parent=79 // pred_check
        %p2749 = pneg %p332
      $region86: #{forward.1} parent=79 // pred_check_branch
        %2751 = sbr.rel (%p2749) target = $region88
      $region87: #{forward.1} parent=79 // pred_region
        %p2752 = scmp.lt.s32.totalorder %s26, 1
        %s2753 = scalar_select %p2752, %s26, 1
        %s2754 = scalar_lea.vmem %s13, %s2753
      $region88: #{forward.1} parent=79 // pred_fallthru
        _
    $region80: #{forward.1} parent=5 // pred_fallthru
      _
  $region6: #{forward.1} parent=0 // loop_footer
    %s24 = sadd.s32 1, %s20
  $region7: #{forward.1} parent=0 // loop_footer_branch
    %19 = sbr.rel target = $region3
  $region8: #{forward.1} parent=0 // loop_exit
    _

</llo_original>
